<compile_context>
chip_gen: v7x
topology: tpu7x:2x2x1
jax: 0.10.0
libtpu: 0.0.40
codegen_flags: <defaults>
</compile_context>

<pallas_src>
import functools

import jax
import jax.numpy as jnp
from jax.experimental import pallas as pl
from jax.experimental.pallas import tpu as pltpu

IN_CHANNELS = 3
OUT_CHANNELS = 16
KERNEL_SIZE = 3
CONSTANT_VALUE = 0.5
SCALING_FACTOR = 2.0


def _conv_min_bias_scale_kernel(x_ref, w_ref, cb_ref, b_ref, o_ref, *,
                                img_w, k_h, k_w):
    # x_ref : (Bblk, Cin, H*W)    pixels on lanes (256 lanes)
    # w_ref : (Cout, Cin*KH*KW)   flattened conv weights
    # cb_ref: (Cout, 1)           conv bias
    # b_ref : (Cout, 1)           extra learned bias
    # o_ref : (Bblk, Cout, H*W)   lane-dense output (valid corner used)
    bsz, c_in, hw = x_ref.shape
    c_out = o_ref.shape[1]

    wmat = w_ref[...]                              # (Cout, 27), loaded once
    cb = cb_ref[...]                               # (Cout, 1)
    bias_scaled = b_ref[...] * SCALING_FACTOR      # (Cout, 1), hoisted epilogue

    for bi in range(bsz):                          # static unroll (1 or 2)
        x = x_ref[bi]                              # (Cin, H*W)
        acc = jnp.zeros((c_out, hw), jnp.float32)
        for kh in range(k_h):
            for kw in range(k_w):
                s = kh * img_w + kw
                if s == 0:
                    xs = x
                else:
                    # left-rotate by s: xs[:, p] == x[:, p + s] for every
                    # valid output lane p (wrapped tail lanes are discarded).
                    xs = jnp.concatenate([x[:, s:], x[:, :s]], axis=-1)
                for ci in range(c_in):
                    t = (ci * k_h + kh) * k_w + kw
                    w_col = wmat[:, t:t + 1]                  # (Cout, 1)
                    acc = acc + w_col * xs[ci:ci + 1, :]      # VPU outer-MAC
        # (min(conv + cb, C) + b) * S  ==  min(conv + cb, C) * S + b * S
        y = jnp.minimum(acc + cb, CONSTANT_VALUE) * SCALING_FACTOR + bias_scaled
        o_ref[bi] = y.astype(o_ref.dtype)


def _num_tensorcores():
    # v7x has 2 TensorCores per chip; v5e/v6e have 1. Safe fallback: 1.
    try:
        kind = jax.devices()[0].device_kind.lower()
    except Exception:
        return 1
    return 2 if ("v7" in kind or "7x" in kind) else 1


def conv_min_add_mul(x_nchw, weight_oihw, conv_bias, extra_bias):
    """x_nchw: (N, Cin, H, W); weight_oihw: (Cout, Cin, KH, KW);
       conv_bias: (Cout,); extra_bias: (Cout, 1, 1). Returns NCHW output."""
    n, c_in, h, w = x_nchw.shape
    c_out, _, k_h, k_w = weight_oihw.shape
    h_out, w_out = h - k_h + 1, w - k_w + 1
    hw = h * w

    # Pure reshapes (contiguous collapses) -- no HBM relayouts.
    x_flat = x_nchw.reshape(n, c_in, hw).astype(jnp.float32)
    w_flat = weight_oihw.reshape(c_out, c_in * k_h * k_w).astype(jnp.float32)
    cb = conv_bias.reshape(c_out, 1).astype(jnp.float32)
    b = extra_bias.reshape(c_out, 1).astype(jnp.float32)

    # One grid step per TensorCore: collapse batch on v5e/v6e, split on v7x.
    n_cores = _num_tensorcores()
    b_blk = n // n_cores if (n_cores > 1 and n % n_cores == 0) else n
    grid = (n // b_blk,)

    kernel = functools.partial(_conv_min_bias_scale_kernel,
                               img_w=w, k_h=k_h, k_w=k_w)

    out_flat = pl.pallas_call(
        kernel,
        out_shape=jax.ShapeDtypeStruct((n, c_out, hw), jnp.float32),
        grid_spec=pltpu.PrefetchScalarGridSpec(
            num_scalar_prefetch=0,
            grid=grid,
            in_specs=[
                pl.BlockSpec((b_blk, c_in, hw), lambda i: (i, 0, 0)),
                pl.BlockSpec((c_out, c_in * k_h * k_w), lambda i: (0, 0)),
                pl.BlockSpec((c_out, 1), lambda i: (0, 0)),
                pl.BlockSpec((c_out, 1), lambda i: (0, 0)),
            ],
            out_specs=pl.BlockSpec((b_blk, c_out, hw), lambda i: (i, 0, 0)),
        ),
        compiler_params=pltpu.CompilerParams(
            dimension_semantics=("parallel",)),
    )(x_flat, w_flat, cb, b)

    # Valid-conv corner: reshape is free; the slice is a tiny copy (no transpose).
    return out_flat.reshape(n, c_out, h, w)[:, :, :h_out, :w_out]


def _reference(x_nchw, weight_oihw, conv_bias, extra_bias):
    y = jax.lax.conv_general_dilated(
        x_nchw, weight_oihw, window_strides=(1, 1), padding="VALID",
        dimension_numbers=("NCHW", "OIHW", "NCHW"))
    y = y + conv_bias.reshape(1, -1, 1, 1)
    y = jnp.minimum(y, CONSTANT_VALUE)
    y = y + extra_bias.reshape(1, -1, 1, 1)
    y = y * SCALING_FACTOR
    return y


if __name__ == "__main__":
    key = jax.random.PRNGKey(0)
    k_x, k_w, k_cb, k_b = jax.random.split(key, 4)

    batch, h, w = 2, 16, 16
    x = jax.random.normal(k_x, (batch, IN_CHANNELS, h, w), dtype=jnp.float32)

    # Deterministic parameter init (synthetic; shapes match nn.Conv2d + bias_shape).
    fan_in = IN_CHANNELS * KERNEL_SIZE * KERNEL_SIZE
    bound = 1.0 / (fan_in ** 0.5)
    weight = jax.random.uniform(
        k_w, (OUT_CHANNELS, IN_CHANNELS, KERNEL_SIZE, KERNEL_SIZE),
        minval=-bound, maxval=bound, dtype=jnp.float32)
    conv_bias = jax.random.uniform(
        k_cb, (OUT_CHANNELS,), minval=-bound, maxval=bound, dtype=jnp.float32)
    extra_bias = jax.random.normal(k_b, (OUT_CHANNELS, 1, 1), dtype=jnp.float32)

    out = jax.block_until_ready(conv_min_add_mul(x, weight, conv_bias, extra_bias))
    ref = jax.block_until_ready(_reference(x, weight, conv_bias, extra_bias))

    assert out.shape == ref.shape == (batch, OUT_CHANNELS, h - 2, w - 2)
    assert jnp.allclose(out, ref, atol=1e-4, rtol=1e-4), \
        float(jnp.max(jnp.abs(out - ref)))

    print("KERNEL_OK")
</pallas_src>

<mosaic_0001>
module attributes {stable_mosaic.version = 11 : i64} {
  func.func @_conv_min_bias_scale_kernel(%arg0: i32, %arg1: memref<2x3x256xf32, #tpu.memory_space<vmem>>, %arg2: memref<16x27xf32, #tpu.memory_space<vmem>>, %arg3: memref<16x1xf32, #tpu.memory_space<vmem>>, %arg4: memref<16x1xf32, #tpu.memory_space<vmem>>, %arg5: memref<2x16x256xf32, #tpu.memory_space<vmem>>) attributes {dimension_semantics = [#tpu.dimension_semantics<parallel>], iteration_bounds = array<i64: 1>, scalar_prefetch = 0 : i64, scratch_operands = 0 : i64, tpu.core_type = #tpu.core_type<tc>, window_params = [{transform_indices = @transform_0, window_bounds = array<i64: 2, 3, 256>}, {pipeline_mode = #tpu.pipeline_mode<synchronous>, transform_indices = @transform_1, window_bounds = array<i64: 16, 27>}, {pipeline_mode = #tpu.pipeline_mode<synchronous>, transform_indices = @transform_2, window_bounds = array<i64: 16, 1>}, {pipeline_mode = #tpu.pipeline_mode<synchronous>, transform_indices = @transform_3, window_bounds = array<i64: 16, 1>}, {transform_indices = @transform_4, window_bounds = array<i64: 2, 16, 256>}]} {
    %c0 = arith.constant 0 : index
    %c0_0 = arith.constant 0 : index
    %0 = vector.load %arg2[%c0, %c0_0] : memref<16x27xf32, #tpu.memory_space<vmem>>, vector<16x27xf32>
    %c0_1 = arith.constant 0 : index
    %c0_2 = arith.constant 0 : index
    %1 = vector.load %arg3[%c0_1, %c0_2] : memref<16x1xf32, #tpu.memory_space<vmem>>, vector<16x1xf32>
    %c0_3 = arith.constant 0 : index
    %c0_4 = arith.constant 0 : index
    %2 = vector.load %arg4[%c0_3, %c0_4] : memref<16x1xf32, #tpu.memory_space<vmem>>, vector<16x1xf32>
    %cst = arith.constant 2.000000e+00 : f32
    %3 = vector.broadcast %cst : f32 to vector<16x1xf32>
    %4 = arith.mulf %2, %3 : vector<16x1xf32>
    %c0_5 = arith.constant 0 : index
    %c0_6 = arith.constant 0 : index
    %c0_7 = arith.constant 0 : index
    %5 = vector.load %arg1[%c0_5, %c0_6, %c0_7] : memref<2x3x256xf32, #tpu.memory_space<vmem>>, vector<1x3x256xf32>
    %6 = vector.shape_cast %5 : vector<1x3x256xf32> to vector<3x256xf32>
    %cst_8 = arith.constant 0.000000e+00 : f32
    %7 = vector.broadcast %cst_8 : f32 to vector<16x256xf32>
    %8 = vector.extract_strided_slice %0 {offsets = [0, 0], sizes = [16, 1], strides = [1, 1]} : vector<16x27xf32> to vector<16x1xf32>
    %9 = vector.extract_strided_slice %6 {offsets = [0, 0], sizes = [1, 256], strides = [1, 1]} : vector<3x256xf32> to vector<1x256xf32>
    %10 = vector.broadcast %8 : vector<16x1xf32> to vector<16x256xf32>
    %11 = vector.broadcast %9 : vector<1x256xf32> to vector<16x256xf32>
    %12 = arith.mulf %10, %11 : vector<16x256xf32>
    %13 = arith.addf %7, %12 : vector<16x256xf32>
    %14 = vector.extract_strided_slice %0 {offsets = [0, 9], sizes = [16, 1], strides = [1, 1]} : vector<16x27xf32> to vector<16x1xf32>
    %15 = vector.extract_strided_slice %6 {offsets = [1, 0], sizes = [1, 256], strides = [1, 1]} : vector<3x256xf32> to vector<1x256xf32>
    %16 = vector.broadcast %14 : vector<16x1xf32> to vector<16x256xf32>
    %17 = vector.broadcast %15 : vector<1x256xf32> to vector<16x256xf32>
    %18 = arith.mulf %16, %17 : vector<16x256xf32>
    %19 = arith.addf %13, %18 : vector<16x256xf32>
    %20 = vector.extract_strided_slice %0 {offsets = [0, 18], sizes = [16, 1], strides = [1, 1]} : vector<16x27xf32> to vector<16x1xf32>
    %21 = vector.extract_strided_slice %6 {offsets = [2, 0], sizes = [1, 256], strides = [1, 1]} : vector<3x256xf32> to vector<1x256xf32>
    %22 = vector.broadcast %20 : vector<16x1xf32> to vector<16x256xf32>
    %23 = vector.broadcast %21 : vector<1x256xf32> to vector<16x256xf32>
    %24 = arith.mulf %22, %23 : vector<16x256xf32>
    %25 = arith.addf %19, %24 : vector<16x256xf32>
    %26 = vector.extract_strided_slice %6 {offsets = [0, 1], sizes = [3, 255], strides = [1, 1]} : vector<3x256xf32> to vector<3x255xf32>
    %27 = vector.extract_strided_slice %6 {offsets = [0, 0], sizes = [3, 1], strides = [1, 1]} : vector<3x256xf32> to vector<3x1xf32>
    %28 = tpu.concatenate %26, %27 in 1 : vector<3x255xf32>, vector<3x1xf32> -> vector<3x256xf32>
    %29 = vector.extract_strided_slice %0 {offsets = [0, 1], sizes = [16, 1], strides = [1, 1]} : vector<16x27xf32> to vector<16x1xf32>
    %30 = vector.extract_strided_slice %28 {offsets = [0, 0], sizes = [1, 256], strides = [1, 1]} : vector<3x256xf32> to vector<1x256xf32>
    %31 = vector.broadcast %29 : vector<16x1xf32> to vector<16x256xf32>
    %32 = vector.broadcast %30 : vector<1x256xf32> to vector<16x256xf32>
    %33 = arith.mulf %31, %32 : vector<16x256xf32>
    %34 = arith.addf %25, %33 : vector<16x256xf32>
    %35 = vector.extract_strided_slice %0 {offsets = [0, 10], sizes = [16, 1], strides = [1, 1]} : vector<16x27xf32> to vector<16x1xf32>
    %36 = vector.extract_strided_slice %28 {offsets = [1, 0], sizes = [1, 256], strides = [1, 1]} : vector<3x256xf32> to vector<1x256xf32>
    %37 = vector.broadcast %35 : vector<16x1xf32> to vector<16x256xf32>
    %38 = vector.broadcast %36 : vector<1x256xf32> to vector<16x256xf32>
    %39 = arith.mulf %37, %38 : vector<16x256xf32>
    %40 = arith.addf %34, %39 : vector<16x256xf32>
    %41 = vector.extract_strided_slice %0 {offsets = [0, 19], sizes = [16, 1], strides = [1, 1]} : vector<16x27xf32> to vector<16x1xf32>
    %42 = vector.extract_strided_slice %28 {offsets = [2, 0], sizes = [1, 256], strides = [1, 1]} : vector<3x256xf32> to vector<1x256xf32>
    %43 = vector.broadcast %41 : vector<16x1xf32> to vector<16x256xf32>
    %44 = vector.broadcast %42 : vector<1x256xf32> to vector<16x256xf32>
    %45 = arith.mulf %43, %44 : vector<16x256xf32>
    %46 = arith.addf %40, %45 : vector<16x256xf32>
    %47 = vector.extract_strided_slice %6 {offsets = [0, 2], sizes = [3, 254], strides = [1, 1]} : vector<3x256xf32> to vector<3x254xf32>
    %48 = vector.extract_strided_slice %6 {offsets = [0, 0], sizes = [3, 2], strides = [1, 1]} : vector<3x256xf32> to vector<3x2xf32>
    %49 = tpu.concatenate %47, %48 in 1 : vector<3x254xf32>, vector<3x2xf32> -> vector<3x256xf32>
    %50 = vector.extract_strided_slice %0 {offsets = [0, 2], sizes = [16, 1], strides = [1, 1]} : vector<16x27xf32> to vector<16x1xf32>
    %51 = vector.extract_strided_slice %49 {offsets = [0, 0], sizes = [1, 256], strides = [1, 1]} : vector<3x256xf32> to vector<1x256xf32>
    %52 = vector.broadcast %50 : vector<16x1xf32> to vector<16x256xf32>
    %53 = vector.broadcast %51 : vector<1x256xf32> to vector<16x256xf32>
    %54 = arith.mulf %52, %53 : vector<16x256xf32>
    %55 = arith.addf %46, %54 : vector<16x256xf32>
    %56 = vector.extract_strided_slice %0 {offsets = [0, 11], sizes = [16, 1], strides = [1, 1]} : vector<16x27xf32> to vector<16x1xf32>
    %57 = vector.extract_strided_slice %49 {offsets = [1, 0], sizes = [1, 256], strides = [1, 1]} : vector<3x256xf32> to vector<1x256xf32>
    %58 = vector.broadcast %56 : vector<16x1xf32> to vector<16x256xf32>
    %59 = vector.broadcast %57 : vector<1x256xf32> to vector<16x256xf32>
    %60 = arith.mulf %58, %59 : vector<16x256xf32>
    %61 = arith.addf %55, %60 : vector<16x256xf32>
    %62 = vector.extract_strided_slice %0 {offsets = [0, 20], sizes = [16, 1], strides = [1, 1]} : vector<16x27xf32> to vector<16x1xf32>
    %63 = vector.extract_strided_slice %49 {offsets = [2, 0], sizes = [1, 256], strides = [1, 1]} : vector<3x256xf32> to vector<1x256xf32>
    %64 = vector.broadcast %62 : vector<16x1xf32> to vector<16x256xf32>
    %65 = vector.broadcast %63 : vector<1x256xf32> to vector<16x256xf32>
    %66 = arith.mulf %64, %65 : vector<16x256xf32>
    %67 = arith.addf %61, %66 : vector<16x256xf32>
    %68 = vector.extract_strided_slice %6 {offsets = [0, 16], sizes = [3, 240], strides = [1, 1]} : vector<3x256xf32> to vector<3x240xf32>
    %69 = vector.extract_strided_slice %6 {offsets = [0, 0], sizes = [3, 16], strides = [1, 1]} : vector<3x256xf32> to vector<3x16xf32>
    %70 = tpu.concatenate %68, %69 in 1 : vector<3x240xf32>, vector<3x16xf32> -> vector<3x256xf32>
    %71 = vector.extract_strided_slice %0 {offsets = [0, 3], sizes = [16, 1], strides = [1, 1]} : vector<16x27xf32> to vector<16x1xf32>
    %72 = vector.extract_strided_slice %70 {offsets = [0, 0], sizes = [1, 256], strides = [1, 1]} : vector<3x256xf32> to vector<1x256xf32>
    %73 = vector.broadcast %71 : vector<16x1xf32> to vector<16x256xf32>
    %74 = vector.broadcast %72 : vector<1x256xf32> to vector<16x256xf32>
    %75 = arith.mulf %73, %74 : vector<16x256xf32>
    %76 = arith.addf %67, %75 : vector<16x256xf32>
    %77 = vector.extract_strided_slice %0 {offsets = [0, 12], sizes = [16, 1], strides = [1, 1]} : vector<16x27xf32> to vector<16x1xf32>
    %78 = vector.extract_strided_slice %70 {offsets = [1, 0], sizes = [1, 256], strides = [1, 1]} : vector<3x256xf32> to vector<1x256xf32>
    %79 = vector.broadcast %77 : vector<16x1xf32> to vector<16x256xf32>
    %80 = vector.broadcast %78 : vector<1x256xf32> to vector<16x256xf32>
    %81 = arith.mulf %79, %80 : vector<16x256xf32>
    %82 = arith.addf %76, %81 : vector<16x256xf32>
    %83 = vector.extract_strided_slice %0 {offsets = [0, 21], sizes = [16, 1], strides = [1, 1]} : vector<16x27xf32> to vector<16x1xf32>
    %84 = vector.extract_strided_slice %70 {offsets = [2, 0], sizes = [1, 256], strides = [1, 1]} : vector<3x256xf32> to vector<1x256xf32>
    %85 = vector.broadcast %83 : vector<16x1xf32> to vector<16x256xf32>
    %86 = vector.broadcast %84 : vector<1x256xf32> to vector<16x256xf32>
    %87 = arith.mulf %85, %86 : vector<16x256xf32>
    %88 = arith.addf %82, %87 : vector<16x256xf32>
    %89 = vector.extract_strided_slice %6 {offsets = [0, 17], sizes = [3, 239], strides = [1, 1]} : vector<3x256xf32> to vector<3x239xf32>
    %90 = vector.extract_strided_slice %6 {offsets = [0, 0], sizes = [3, 17], strides = [1, 1]} : vector<3x256xf32> to vector<3x17xf32>
    %91 = tpu.concatenate %89, %90 in 1 : vector<3x239xf32>, vector<3x17xf32> -> vector<3x256xf32>
    %92 = vector.extract_strided_slice %0 {offsets = [0, 4], sizes = [16, 1], strides = [1, 1]} : vector<16x27xf32> to vector<16x1xf32>
    %93 = vector.extract_strided_slice %91 {offsets = [0, 0], sizes = [1, 256], strides = [1, 1]} : vector<3x256xf32> to vector<1x256xf32>
    %94 = vector.broadcast %92 : vector<16x1xf32> to vector<16x256xf32>
    %95 = vector.broadcast %93 : vector<1x256xf32> to vector<16x256xf32>
    %96 = arith.mulf %94, %95 : vector<16x256xf32>
    %97 = arith.addf %88, %96 : vector<16x256xf32>
    %98 = vector.extract_strided_slice %0 {offsets = [0, 13], sizes = [16, 1], strides = [1, 1]} : vector<16x27xf32> to vector<16x1xf32>
    %99 = vector.extract_strided_slice %91 {offsets = [1, 0], sizes = [1, 256], strides = [1, 1]} : vector<3x256xf32> to vector<1x256xf32>
    %100 = vector.broadcast %98 : vector<16x1xf32> to vector<16x256xf32>
    %101 = vector.broadcast %99 : vector<1x256xf32> to vector<16x256xf32>
    %102 = arith.mulf %100, %101 : vector<16x256xf32>
    %103 = arith.addf %97, %102 : vector<16x256xf32>
    %104 = vector.extract_strided_slice %0 {offsets = [0, 22], sizes = [16, 1], strides = [1, 1]} : vector<16x27xf32> to vector<16x1xf32>
    %105 = vector.extract_strided_slice %91 {offsets = [2, 0], sizes = [1, 256], strides = [1, 1]} : vector<3x256xf32> to vector<1x256xf32>
    %106 = vector.broadcast %104 : vector<16x1xf32> to vector<16x256xf32>
    %107 = vector.broadcast %105 : vector<1x256xf32> to vector<16x256xf32>
    %108 = arith.mulf %106, %107 : vector<16x256xf32>
    %109 = arith.addf %103, %108 : vector<16x256xf32>
    %110 = vector.extract_strided_slice %6 {offsets = [0, 18], sizes = [3, 238], strides = [1, 1]} : vector<3x256xf32> to vector<3x238xf32>
    %111 = vector.extract_strided_slice %6 {offsets = [0, 0], sizes = [3, 18], strides = [1, 1]} : vector<3x256xf32> to vector<3x18xf32>
    %112 = tpu.concatenate %110, %111 in 1 : vector<3x238xf32>, vector<3x18xf32> -> vector<3x256xf32>
    %113 = vector.extract_strided_slice %0 {offsets = [0, 5], sizes = [16, 1], strides = [1, 1]} : vector<16x27xf32> to vector<16x1xf32>
    %114 = vector.extract_strided_slice %112 {offsets = [0, 0], sizes = [1, 256], strides = [1, 1]} : vector<3x256xf32> to vector<1x256xf32>
    %115 = vector.broadcast %113 : vector<16x1xf32> to vector<16x256xf32>
    %116 = vector.broadcast %114 : vector<1x256xf32> to vector<16x256xf32>
    %117 = arith.mulf %115, %116 : vector<16x256xf32>
    %118 = arith.addf %109, %117 : vector<16x256xf32>
    %119 = vector.extract_strided_slice %0 {offsets = [0, 14], sizes = [16, 1], strides = [1, 1]} : vector<16x27xf32> to vector<16x1xf32>
    %120 = vector.extract_strided_slice %112 {offsets = [1, 0], sizes = [1, 256], strides = [1, 1]} : vector<3x256xf32> to vector<1x256xf32>
    %121 = vector.broadcast %119 : vector<16x1xf32> to vector<16x256xf32>
    %122 = vector.broadcast %120 : vector<1x256xf32> to vector<16x256xf32>
    %123 = arith.mulf %121, %122 : vector<16x256xf32>
    %124 = arith.addf %118, %123 : vector<16x256xf32>
    %125 = vector.extract_strided_slice %0 {offsets = [0, 23], sizes = [16, 1], strides = [1, 1]} : vector<16x27xf32> to vector<16x1xf32>
    %126 = vector.extract_strided_slice %112 {offsets = [2, 0], sizes = [1, 256], strides = [1, 1]} : vector<3x256xf32> to vector<1x256xf32>
    %127 = vector.broadcast %125 : vector<16x1xf32> to vector<16x256xf32>
    %128 = vector.broadcast %126 : vector<1x256xf32> to vector<16x256xf32>
    %129 = arith.mulf %127, %128 : vector<16x256xf32>
    %130 = arith.addf %124, %129 : vector<16x256xf32>
    %131 = vector.extract_strided_slice %6 {offsets = [0, 32], sizes = [3, 224], strides = [1, 1]} : vector<3x256xf32> to vector<3x224xf32>
    %132 = vector.extract_strided_slice %6 {offsets = [0, 0], sizes = [3, 32], strides = [1, 1]} : vector<3x256xf32> to vector<3x32xf32>
    %133 = tpu.concatenate %131, %132 in 1 : vector<3x224xf32>, vector<3x32xf32> -> vector<3x256xf32>
    %134 = vector.extract_strided_slice %0 {offsets = [0, 6], sizes = [16, 1], strides = [1, 1]} : vector<16x27xf32> to vector<16x1xf32>
    %135 = vector.extract_strided_slice %133 {offsets = [0, 0], sizes = [1, 256], strides = [1, 1]} : vector<3x256xf32> to vector<1x256xf32>
    %136 = vector.broadcast %134 : vector<16x1xf32> to vector<16x256xf32>
    %137 = vector.broadcast %135 : vector<1x256xf32> to vector<16x256xf32>
    %138 = arith.mulf %136, %137 : vector<16x256xf32>
    %139 = arith.addf %130, %138 : vector<16x256xf32>
    %140 = vector.extract_strided_slice %0 {offsets = [0, 15], sizes = [16, 1], strides = [1, 1]} : vector<16x27xf32> to vector<16x1xf32>
    %141 = vector.extract_strided_slice %133 {offsets = [1, 0], sizes = [1, 256], strides = [1, 1]} : vector<3x256xf32> to vector<1x256xf32>
    %142 = vector.broadcast %140 : vector<16x1xf32> to vector<16x256xf32>
    %143 = vector.broadcast %141 : vector<1x256xf32> to vector<16x256xf32>
    %144 = arith.mulf %142, %143 : vector<16x256xf32>
    %145 = arith.addf %139, %144 : vector<16x256xf32>
    %146 = vector.extract_strided_slice %0 {offsets = [0, 24], sizes = [16, 1], strides = [1, 1]} : vector<16x27xf32> to vector<16x1xf32>
    %147 = vector.extract_strided_slice %133 {offsets = [2, 0], sizes = [1, 256], strides = [1, 1]} : vector<3x256xf32> to vector<1x256xf32>
    %148 = vector.broadcast %146 : vector<16x1xf32> to vector<16x256xf32>
    %149 = vector.broadcast %147 : vector<1x256xf32> to vector<16x256xf32>
    %150 = arith.mulf %148, %149 : vector<16x256xf32>
    %151 = arith.addf %145, %150 : vector<16x256xf32>
    %152 = vector.extract_strided_slice %6 {offsets = [0, 33], sizes = [3, 223], strides = [1, 1]} : vector<3x256xf32> to vector<3x223xf32>
    %153 = vector.extract_strided_slice %6 {offsets = [0, 0], sizes = [3, 33], strides = [1, 1]} : vector<3x256xf32> to vector<3x33xf32>
    %154 = tpu.concatenate %152, %153 in 1 : vector<3x223xf32>, vector<3x33xf32> -> vector<3x256xf32>
    %155 = vector.extract_strided_slice %0 {offsets = [0, 7], sizes = [16, 1], strides = [1, 1]} : vector<16x27xf32> to vector<16x1xf32>
    %156 = vector.extract_strided_slice %154 {offsets = [0, 0], sizes = [1, 256], strides = [1, 1]} : vector<3x256xf32> to vector<1x256xf32>
    %157 = vector.broadcast %155 : vector<16x1xf32> to vector<16x256xf32>
    %158 = vector.broadcast %156 : vector<1x256xf32> to vector<16x256xf32>
    %159 = arith.mulf %157, %158 : vector<16x256xf32>
    %160 = arith.addf %151, %159 : vector<16x256xf32>
    %161 = vector.extract_strided_slice %0 {offsets = [0, 16], sizes = [16, 1], strides = [1, 1]} : vector<16x27xf32> to vector<16x1xf32>
    %162 = vector.extract_strided_slice %154 {offsets = [1, 0], sizes = [1, 256], strides = [1, 1]} : vector<3x256xf32> to vector<1x256xf32>
    %163 = vector.broadcast %161 : vector<16x1xf32> to vector<16x256xf32>
    %164 = vector.broadcast %162 : vector<1x256xf32> to vector<16x256xf32>
    %165 = arith.mulf %163, %164 : vector<16x256xf32>
    %166 = arith.addf %160, %165 : vector<16x256xf32>
    %167 = vector.extract_strided_slice %0 {offsets = [0, 25], sizes = [16, 1], strides = [1, 1]} : vector<16x27xf32> to vector<16x1xf32>
    %168 = vector.extract_strided_slice %154 {offsets = [2, 0], sizes = [1, 256], strides = [1, 1]} : vector<3x256xf32> to vector<1x256xf32>
    %169 = vector.broadcast %167 : vector<16x1xf32> to vector<16x256xf32>
    %170 = vector.broadcast %168 : vector<1x256xf32> to vector<16x256xf32>
    %171 = arith.mulf %169, %170 : vector<16x256xf32>
    %172 = arith.addf %166, %171 : vector<16x256xf32>
    %173 = vector.extract_strided_slice %6 {offsets = [0, 34], sizes = [3, 222], strides = [1, 1]} : vector<3x256xf32> to vector<3x222xf32>
    %174 = vector.extract_strided_slice %6 {offsets = [0, 0], sizes = [3, 34], strides = [1, 1]} : vector<3x256xf32> to vector<3x34xf32>
    %175 = tpu.concatenate %173, %174 in 1 : vector<3x222xf32>, vector<3x34xf32> -> vector<3x256xf32>
    %176 = vector.extract_strided_slice %0 {offsets = [0, 8], sizes = [16, 1], strides = [1, 1]} : vector<16x27xf32> to vector<16x1xf32>
    %177 = vector.extract_strided_slice %175 {offsets = [0, 0], sizes = [1, 256], strides = [1, 1]} : vector<3x256xf32> to vector<1x256xf32>
    %178 = vector.broadcast %176 : vector<16x1xf32> to vector<16x256xf32>
    %179 = vector.broadcast %177 : vector<1x256xf32> to vector<16x256xf32>
    %180 = arith.mulf %178, %179 : vector<16x256xf32>
    %181 = arith.addf %172, %180 : vector<16x256xf32>
    %182 = vector.extract_strided_slice %0 {offsets = [0, 17], sizes = [16, 1], strides = [1, 1]} : vector<16x27xf32> to vector<16x1xf32>
    %183 = vector.extract_strided_slice %175 {offsets = [1, 0], sizes = [1, 256], strides = [1, 1]} : vector<3x256xf32> to vector<1x256xf32>
    %184 = vector.broadcast %182 : vector<16x1xf32> to vector<16x256xf32>
    %185 = vector.broadcast %183 : vector<1x256xf32> to vector<16x256xf32>
    %186 = arith.mulf %184, %185 : vector<16x256xf32>
    %187 = arith.addf %181, %186 : vector<16x256xf32>
    %188 = vector.extract_strided_slice %0 {offsets = [0, 26], sizes = [16, 1], strides = [1, 1]} : vector<16x27xf32> to vector<16x1xf32>
    %189 = vector.extract_strided_slice %175 {offsets = [2, 0], sizes = [1, 256], strides = [1, 1]} : vector<3x256xf32> to vector<1x256xf32>
    %190 = vector.broadcast %188 : vector<16x1xf32> to vector<16x256xf32>
    %191 = vector.broadcast %189 : vector<1x256xf32> to vector<16x256xf32>
    %192 = arith.mulf %190, %191 : vector<16x256xf32>
    %193 = arith.addf %187, %192 : vector<16x256xf32>
    %194 = vector.broadcast %1 : vector<16x1xf32> to vector<16x256xf32>
    %195 = arith.addf %193, %194 : vector<16x256xf32>
    %cst_9 = arith.constant 5.000000e-01 : f32
    %196 = vector.broadcast %cst_9 : f32 to vector<16x256xf32>
    %197 = arith.minimumf %195, %196 : vector<16x256xf32>
    %cst_10 = arith.constant 2.000000e+00 : f32
    %198 = vector.broadcast %cst_10 : f32 to vector<16x256xf32>
    %199 = arith.mulf %197, %198 : vector<16x256xf32>
    %200 = vector.broadcast %4 : vector<16x1xf32> to vector<16x256xf32>
    %201 = arith.addf %199, %200 : vector<16x256xf32>
    %c0_11 = arith.constant 0 : index
    %c0_12 = arith.constant 0 : index
    %c0_13 = arith.constant 0 : index
    %202 = vector.load %arg5[%c0_11, %c0_12, %c0_13] : memref<2x16x256xf32, #tpu.memory_space<vmem>>, vector<1x16x256xf32>
    %203 = vector.shape_cast %202 : vector<1x16x256xf32> to vector<16x256xf32>
    %204 = vector.shape_cast %201 : vector<16x256xf32> to vector<1x16x256xf32>
    tpu.vector_store %arg5[%c0_11, %c0_12, %c0_13], %204 {strides = array<i32>} : memref<2x16x256xf32, #tpu.memory_space<vmem>>, vector<1x16x256xf32>,
    %c1 = arith.constant 1 : index
    %c0_14 = arith.constant 0 : index
    %c0_15 = arith.constant 0 : index
    %205 = vector.load %arg1[%c1, %c0_14, %c0_15] : memref<2x3x256xf32, #tpu.memory_space<vmem>>, vector<1x3x256xf32>
    %206 = vector.shape_cast %205 : vector<1x3x256xf32> to vector<3x256xf32>
    %cst_16 = arith.constant 0.000000e+00 : f32
    %207 = vector.broadcast %cst_16 : f32 to vector<16x256xf32>
    %208 = vector.extract_strided_slice %0 {offsets = [0, 0], sizes = [16, 1], strides = [1, 1]} : vector<16x27xf32> to vector<16x1xf32>
    %209 = vector.extract_strided_slice %206 {offsets = [0, 0], sizes = [1, 256], strides = [1, 1]} : vector<3x256xf32> to vector<1x256xf32>
    %210 = vector.broadcast %208 : vector<16x1xf32> to vector<16x256xf32>
    %211 = vector.broadcast %209 : vector<1x256xf32> to vector<16x256xf32>
    %212 = arith.mulf %210, %211 : vector<16x256xf32>
    %213 = arith.addf %207, %212 : vector<16x256xf32>
    %214 = vector.extract_strided_slice %0 {offsets = [0, 9], sizes = [16, 1], strides = [1, 1]} : vector<16x27xf32> to vector<16x1xf32>
    %215 = vector.extract_strided_slice %206 {offsets = [1, 0], sizes = [1, 256], strides = [1, 1]} : vector<3x256xf32> to vector<1x256xf32>
    %216 = vector.broadcast %214 : vector<16x1xf32> to vector<16x256xf32>
    %217 = vector.broadcast %215 : vector<1x256xf32> to vector<16x256xf32>
    %218 = arith.mulf %216, %217 : vector<16x256xf32>
    %219 = arith.addf %213, %218 : vector<16x256xf32>
    %220 = vector.extract_strided_slice %0 {offsets = [0, 18], sizes = [16, 1], strides = [1, 1]} : vector<16x27xf32> to vector<16x1xf32>
    %221 = vector.extract_strided_slice %206 {offsets = [2, 0], sizes = [1, 256], strides = [1, 1]} : vector<3x256xf32> to vector<1x256xf32>
    %222 = vector.broadcast %220 : vector<16x1xf32> to vector<16x256xf32>
    %223 = vector.broadcast %221 : vector<1x256xf32> to vector<16x256xf32>
    %224 = arith.mulf %222, %223 : vector<16x256xf32>
    %225 = arith.addf %219, %224 : vector<16x256xf32>
    %226 = vector.extract_strided_slice %206 {offsets = [0, 1], sizes = [3, 255], strides = [1, 1]} : vector<3x256xf32> to vector<3x255xf32>
    %227 = vector.extract_strided_slice %206 {offsets = [0, 0], sizes = [3, 1], strides = [1, 1]} : vector<3x256xf32> to vector<3x1xf32>
    %228 = tpu.concatenate %226, %227 in 1 : vector<3x255xf32>, vector<3x1xf32> -> vector<3x256xf32>
    %229 = vector.extract_strided_slice %0 {offsets = [0, 1], sizes = [16, 1], strides = [1, 1]} : vector<16x27xf32> to vector<16x1xf32>
    %230 = vector.extract_strided_slice %228 {offsets = [0, 0], sizes = [1, 256], strides = [1, 1]} : vector<3x256xf32> to vector<1x256xf32>
    %231 = vector.broadcast %229 : vector<16x1xf32> to vector<16x256xf32>
    %232 = vector.broadcast %230 : vector<1x256xf32> to vector<16x256xf32>
    %233 = arith.mulf %231, %232 : vector<16x256xf32>
    %234 = arith.addf %225, %233 : vector<16x256xf32>
    %235 = vector.extract_strided_slice %0 {offsets = [0, 10], sizes = [16, 1], strides = [1, 1]} : vector<16x27xf32> to vector<16x1xf32>
    %236 = vector.extract_strided_slice %228 {offsets = [1, 0], sizes = [1, 256], strides = [1, 1]} : vector<3x256xf32> to vector<1x256xf32>
    %237 = vector.broadcast %235 : vector<16x1xf32> to vector<16x256xf32>
    %238 = vector.broadcast %236 : vector<1x256xf32> to vector<16x256xf32>
    %239 = arith.mulf %237, %238 : vector<16x256xf32>
    %240 = arith.addf %234, %239 : vector<16x256xf32>
    %241 = vector.extract_strided_slice %0 {offsets = [0, 19], sizes = [16, 1], strides = [1, 1]} : vector<16x27xf32> to vector<16x1xf32>
    %242 = vector.extract_strided_slice %228 {offsets = [2, 0], sizes = [1, 256], strides = [1, 1]} : vector<3x256xf32> to vector<1x256xf32>
    %243 = vector.broadcast %241 : vector<16x1xf32> to vector<16x256xf32>
    %244 = vector.broadcast %242 : vector<1x256xf32> to vector<16x256xf32>
    %245 = arith.mulf %243, %244 : vector<16x256xf32>
    %246 = arith.addf %240, %245 : vector<16x256xf32>
    %247 = vector.extract_strided_slice %206 {offsets = [0, 2], sizes = [3, 254], strides = [1, 1]} : vector<3x256xf32> to vector<3x254xf32>
    %248 = vector.extract_strided_slice %206 {offsets = [0, 0], sizes = [3, 2], strides = [1, 1]} : vector<3x256xf32> to vector<3x2xf32>
    %249 = tpu.concatenate %247, %248 in 1 : vector<3x254xf32>, vector<3x2xf32> -> vector<3x256xf32>
    %250 = vector.extract_strided_slice %0 {offsets = [0, 2], sizes = [16, 1], strides = [1, 1]} : vector<16x27xf32> to vector<16x1xf32>
    %251 = vector.extract_strided_slice %249 {offsets = [0, 0], sizes = [1, 256], strides = [1, 1]} : vector<3x256xf32> to vector<1x256xf32>
    %252 = vector.broadcast %250 : vector<16x1xf32> to vector<16x256xf32>
    %253 = vector.broadcast %251 : vector<1x256xf32> to vector<16x256xf32>
    %254 = arith.mulf %252, %253 : vector<16x256xf32>
    %255 = arith.addf %246, %254 : vector<16x256xf32>
    %256 = vector.extract_strided_slice %0 {offsets = [0, 11], sizes = [16, 1], strides = [1, 1]} : vector<16x27xf32> to vector<16x1xf32>
    %257 = vector.extract_strided_slice %249 {offsets = [1, 0], sizes = [1, 256], strides = [1, 1]} : vector<3x256xf32> to vector<1x256xf32>
    %258 = vector.broadcast %256 : vector<16x1xf32> to vector<16x256xf32>
    %259 = vector.broadcast %257 : vector<1x256xf32> to vector<16x256xf32>
    %260 = arith.mulf %258, %259 : vector<16x256xf32>
    %261 = arith.addf %255, %260 : vector<16x256xf32>
    %262 = vector.extract_strided_slice %0 {offsets = [0, 20], sizes = [16, 1], strides = [1, 1]} : vector<16x27xf32> to vector<16x1xf32>
    %263 = vector.extract_strided_slice %249 {offsets = [2, 0], sizes = [1, 256], strides = [1, 1]} : vector<3x256xf32> to vector<1x256xf32>
    %264 = vector.broadcast %262 : vector<16x1xf32> to vector<16x256xf32>
    %265 = vector.broadcast %263 : vector<1x256xf32> to vector<16x256xf32>
    %266 = arith.mulf %264, %265 : vector<16x256xf32>
    %267 = arith.addf %261, %266 : vector<16x256xf32>
    %268 = vector.extract_strided_slice %206 {offsets = [0, 16], sizes = [3, 240], strides = [1, 1]} : vector<3x256xf32> to vector<3x240xf32>
    %269 = vector.extract_strided_slice %206 {offsets = [0, 0], sizes = [3, 16], strides = [1, 1]} : vector<3x256xf32> to vector<3x16xf32>
    %270 = tpu.concatenate %268, %269 in 1 : vector<3x240xf32>, vector<3x16xf32> -> vector<3x256xf32>
    %271 = vector.extract_strided_slice %0 {offsets = [0, 3], sizes = [16, 1], strides = [1, 1]} : vector<16x27xf32> to vector<16x1xf32>
    %272 = vector.extract_strided_slice %270 {offsets = [0, 0], sizes = [1, 256], strides = [1, 1]} : vector<3x256xf32> to vector<1x256xf32>
    %273 = vector.broadcast %271 : vector<16x1xf32> to vector<16x256xf32>
    %274 = vector.broadcast %272 : vector<1x256xf32> to vector<16x256xf32>
    %275 = arith.mulf %273, %274 : vector<16x256xf32>
    %276 = arith.addf %267, %275 : vector<16x256xf32>
    %277 = vector.extract_strided_slice %0 {offsets = [0, 12], sizes = [16, 1], strides = [1, 1]} : vector<16x27xf32> to vector<16x1xf32>
    %278 = vector.extract_strided_slice %270 {offsets = [1, 0], sizes = [1, 256], strides = [1, 1]} : vector<3x256xf32> to vector<1x256xf32>
    %279 = vector.broadcast %277 : vector<16x1xf32> to vector<16x256xf32>
    %280 = vector.broadcast %278 : vector<1x256xf32> to vector<16x256xf32>
    %281 = arith.mulf %279, %280 : vector<16x256xf32>
    %282 = arith.addf %276, %281 : vector<16x256xf32>
    %283 = vector.extract_strided_slice %0 {offsets = [0, 21], sizes = [16, 1], strides = [1, 1]} : vector<16x27xf32> to vector<16x1xf32>
    %284 = vector.extract_strided_slice %270 {offsets = [2, 0], sizes = [1, 256], strides = [1, 1]} : vector<3x256xf32> to vector<1x256xf32>
    %285 = vector.broadcast %283 : vector<16x1xf32> to vector<16x256xf32>
    %286 = vector.broadcast %284 : vector<1x256xf32> to vector<16x256xf32>
    %287 = arith.mulf %285, %286 : vector<16x256xf32>
    %288 = arith.addf %282, %287 : vector<16x256xf32>
    %289 = vector.extract_strided_slice %206 {offsets = [0, 17], sizes = [3, 239], strides = [1, 1]} : vector<3x256xf32> to vector<3x239xf32>
    %290 = vector.extract_strided_slice %206 {offsets = [0, 0], sizes = [3, 17], strides = [1, 1]} : vector<3x256xf32> to vector<3x17xf32>
    %291 = tpu.concatenate %289, %290 in 1 : vector<3x239xf32>, vector<3x17xf32> -> vector<3x256xf32>
    %292 = vector.extract_strided_slice %0 {offsets = [0, 4], sizes = [16, 1], strides = [1, 1]} : vector<16x27xf32> to vector<16x1xf32>
    %293 = vector.extract_strided_slice %291 {offsets = [0, 0], sizes = [1, 256], strides = [1, 1]} : vector<3x256xf32> to vector<1x256xf32>
    %294 = vector.broadcast %292 : vector<16x1xf32> to vector<16x256xf32>
    %295 = vector.broadcast %293 : vector<1x256xf32> to vector<16x256xf32>
    %296 = arith.mulf %294, %295 : vector<16x256xf32>
    %297 = arith.addf %288, %296 : vector<16x256xf32>
    %298 = vector.extract_strided_slice %0 {offsets = [0, 13], sizes = [16, 1], strides = [1, 1]} : vector<16x27xf32> to vector<16x1xf32>
    %299 = vector.extract_strided_slice %291 {offsets = [1, 0], sizes = [1, 256], strides = [1, 1]} : vector<3x256xf32> to vector<1x256xf32>
    %300 = vector.broadcast %298 : vector<16x1xf32> to vector<16x256xf32>
    %301 = vector.broadcast %299 : vector<1x256xf32> to vector<16x256xf32>
    %302 = arith.mulf %300, %301 : vector<16x256xf32>
    %303 = arith.addf %297, %302 : vector<16x256xf32>
    %304 = vector.extract_strided_slice %0 {offsets = [0, 22], sizes = [16, 1], strides = [1, 1]} : vector<16x27xf32> to vector<16x1xf32>
    %305 = vector.extract_strided_slice %291 {offsets = [2, 0], sizes = [1, 256], strides = [1, 1]} : vector<3x256xf32> to vector<1x256xf32>
    %306 = vector.broadcast %304 : vector<16x1xf32> to vector<16x256xf32>
    %307 = vector.broadcast %305 : vector<1x256xf32> to vector<16x256xf32>
    %308 = arith.mulf %306, %307 : vector<16x256xf32>
    %309 = arith.addf %303, %308 : vector<16x256xf32>
    %310 = vector.extract_strided_slice %206 {offsets = [0, 18], sizes = [3, 238], strides = [1, 1]} : vector<3x256xf32> to vector<3x238xf32>
    %311 = vector.extract_strided_slice %206 {offsets = [0, 0], sizes = [3, 18], strides = [1, 1]} : vector<3x256xf32> to vector<3x18xf32>
    %312 = tpu.concatenate %310, %311 in 1 : vector<3x238xf32>, vector<3x18xf32> -> vector<3x256xf32>
    %313 = vector.extract_strided_slice %0 {offsets = [0, 5], sizes = [16, 1], strides = [1, 1]} : vector<16x27xf32> to vector<16x1xf32>
    %314 = vector.extract_strided_slice %312 {offsets = [0, 0], sizes = [1, 256], strides = [1, 1]} : vector<3x256xf32> to vector<1x256xf32>
    %315 = vector.broadcast %313 : vector<16x1xf32> to vector<16x256xf32>
    %316 = vector.broadcast %314 : vector<1x256xf32> to vector<16x256xf32>
    %317 = arith.mulf %315, %316 : vector<16x256xf32>
    %318 = arith.addf %309, %317 : vector<16x256xf32>
    %319 = vector.extract_strided_slice %0 {offsets = [0, 14], sizes = [16, 1], strides = [1, 1]} : vector<16x27xf32> to vector<16x1xf32>
    %320 = vector.extract_strided_slice %312 {offsets = [1, 0], sizes = [1, 256], strides = [1, 1]} : vector<3x256xf32> to vector<1x256xf32>
    %321 = vector.broadcast %319 : vector<16x1xf32> to vector<16x256xf32>
    %322 = vector.broadcast %320 : vector<1x256xf32> to vector<16x256xf32>
    %323 = arith.mulf %321, %322 : vector<16x256xf32>
    %324 = arith.addf %318, %323 : vector<16x256xf32>
    %325 = vector.extract_strided_slice %0 {offsets = [0, 23], sizes = [16, 1], strides = [1, 1]} : vector<16x27xf32> to vector<16x1xf32>
    %326 = vector.extract_strided_slice %312 {offsets = [2, 0], sizes = [1, 256], strides = [1, 1]} : vector<3x256xf32> to vector<1x256xf32>
    %327 = vector.broadcast %325 : vector<16x1xf32> to vector<16x256xf32>
    %328 = vector.broadcast %326 : vector<1x256xf32> to vector<16x256xf32>
    %329 = arith.mulf %327, %328 : vector<16x256xf32>
    %330 = arith.addf %324, %329 : vector<16x256xf32>
    %331 = vector.extract_strided_slice %206 {offsets = [0, 32], sizes = [3, 224], strides = [1, 1]} : vector<3x256xf32> to vector<3x224xf32>
    %332 = vector.extract_strided_slice %206 {offsets = [0, 0], sizes = [3, 32], strides = [1, 1]} : vector<3x256xf32> to vector<3x32xf32>
    %333 = tpu.concatenate %331, %332 in 1 : vector<3x224xf32>, vector<3x32xf32> -> vector<3x256xf32>
    %334 = vector.extract_strided_slice %0 {offsets = [0, 6], sizes = [16, 1], strides = [1, 1]} : vector<16x27xf32> to vector<16x1xf32>
    %335 = vector.extract_strided_slice %333 {offsets = [0, 0], sizes = [1, 256], strides = [1, 1]} : vector<3x256xf32> to vector<1x256xf32>
    %336 = vector.broadcast %334 : vector<16x1xf32> to vector<16x256xf32>
    %337 = vector.broadcast %335 : vector<1x256xf32> to vector<16x256xf32>
    %338 = arith.mulf %336, %337 : vector<16x256xf32>
    %339 = arith.addf %330, %338 : vector<16x256xf32>
    %340 = vector.extract_strided_slice %0 {offsets = [0, 15], sizes = [16, 1], strides = [1, 1]} : vector<16x27xf32> to vector<16x1xf32>
    %341 = vector.extract_strided_slice %333 {offsets = [1, 0], sizes = [1, 256], strides = [1, 1]} : vector<3x256xf32> to vector<1x256xf32>
    %342 = vector.broadcast %340 : vector<16x1xf32> to vector<16x256xf32>
    %343 = vector.broadcast %341 : vector<1x256xf32> to vector<16x256xf32>
    %344 = arith.mulf %342, %343 : vector<16x256xf32>
    %345 = arith.addf %339, %344 : vector<16x256xf32>
    %346 = vector.extract_strided_slice %0 {offsets = [0, 24], sizes = [16, 1], strides = [1, 1]} : vector<16x27xf32> to vector<16x1xf32>
    %347 = vector.extract_strided_slice %333 {offsets = [2, 0], sizes = [1, 256], strides = [1, 1]} : vector<3x256xf32> to vector<1x256xf32>
    %348 = vector.broadcast %346 : vector<16x1xf32> to vector<16x256xf32>
    %349 = vector.broadcast %347 : vector<1x256xf32> to vector<16x256xf32>
    %350 = arith.mulf %348, %349 : vector<16x256xf32>
    %351 = arith.addf %345, %350 : vector<16x256xf32>
    %352 = vector.extract_strided_slice %206 {offsets = [0, 33], sizes = [3, 223], strides = [1, 1]} : vector<3x256xf32> to vector<3x223xf32>
    %353 = vector.extract_strided_slice %206 {offsets = [0, 0], sizes = [3, 33], strides = [1, 1]} : vector<3x256xf32> to vector<3x33xf32>
    %354 = tpu.concatenate %352, %353 in 1 : vector<3x223xf32>, vector<3x33xf32> -> vector<3x256xf32>
    %355 = vector.extract_strided_slice %0 {offsets = [0, 7], sizes = [16, 1], strides = [1, 1]} : vector<16x27xf32> to vector<16x1xf32>
    %356 = vector.extract_strided_slice %354 {offsets = [0, 0], sizes = [1, 256], strides = [1, 1]} : vector<3x256xf32> to vector<1x256xf32>
    %357 = vector.broadcast %355 : vector<16x1xf32> to vector<16x256xf32>
    %358 = vector.broadcast %356 : vector<1x256xf32> to vector<16x256xf32>
    %359 = arith.mulf %357, %358 : vector<16x256xf32>
    %360 = arith.addf %351, %359 : vector<16x256xf32>
    %361 = vector.extract_strided_slice %0 {offsets = [0, 16], sizes = [16, 1], strides = [1, 1]} : vector<16x27xf32> to vector<16x1xf32>
    %362 = vector.extract_strided_slice %354 {offsets = [1, 0], sizes = [1, 256], strides = [1, 1]} : vector<3x256xf32> to vector<1x256xf32>
    %363 = vector.broadcast %361 : vector<16x1xf32> to vector<16x256xf32>
    %364 = vector.broadcast %362 : vector<1x256xf32> to vector<16x256xf32>
    %365 = arith.mulf %363, %364 : vector<16x256xf32>
    %366 = arith.addf %360, %365 : vector<16x256xf32>
    %367 = vector.extract_strided_slice %0 {offsets = [0, 25], sizes = [16, 1], strides = [1, 1]} : vector<16x27xf32> to vector<16x1xf32>
    %368 = vector.extract_strided_slice %354 {offsets = [2, 0], sizes = [1, 256], strides = [1, 1]} : vector<3x256xf32> to vector<1x256xf32>
    %369 = vector.broadcast %367 : vector<16x1xf32> to vector<16x256xf32>
    %370 = vector.broadcast %368 : vector<1x256xf32> to vector<16x256xf32>
    %371 = arith.mulf %369, %370 : vector<16x256xf32>
    %372 = arith.addf %366, %371 : vector<16x256xf32>
    %373 = vector.extract_strided_slice %206 {offsets = [0, 34], sizes = [3, 222], strides = [1, 1]} : vector<3x256xf32> to vector<3x222xf32>
    %374 = vector.extract_strided_slice %206 {offsets = [0, 0], sizes = [3, 34], strides = [1, 1]} : vector<3x256xf32> to vector<3x34xf32>
    %375 = tpu.concatenate %373, %374 in 1 : vector<3x222xf32>, vector<3x34xf32> -> vector<3x256xf32>
    %376 = vector.extract_strided_slice %0 {offsets = [0, 8], sizes = [16, 1], strides = [1, 1]} : vector<16x27xf32> to vector<16x1xf32>
    %377 = vector.extract_strided_slice %375 {offsets = [0, 0], sizes = [1, 256], strides = [1, 1]} : vector<3x256xf32> to vector<1x256xf32>
    %378 = vector.broadcast %376 : vector<16x1xf32> to vector<16x256xf32>
    %379 = vector.broadcast %377 : vector<1x256xf32> to vector<16x256xf32>
    %380 = arith.mulf %378, %379 : vector<16x256xf32>
    %381 = arith.addf %372, %380 : vector<16x256xf32>
    %382 = vector.extract_strided_slice %0 {offsets = [0, 17], sizes = [16, 1], strides = [1, 1]} : vector<16x27xf32> to vector<16x1xf32>
    %383 = vector.extract_strided_slice %375 {offsets = [1, 0], sizes = [1, 256], strides = [1, 1]} : vector<3x256xf32> to vector<1x256xf32>
    %384 = vector.broadcast %382 : vector<16x1xf32> to vector<16x256xf32>
    %385 = vector.broadcast %383 : vector<1x256xf32> to vector<16x256xf32>
    %386 = arith.mulf %384, %385 : vector<16x256xf32>
    %387 = arith.addf %381, %386 : vector<16x256xf32>
    %388 = vector.extract_strided_slice %0 {offsets = [0, 26], sizes = [16, 1], strides = [1, 1]} : vector<16x27xf32> to vector<16x1xf32>
    %389 = vector.extract_strided_slice %375 {offsets = [2, 0], sizes = [1, 256], strides = [1, 1]} : vector<3x256xf32> to vector<1x256xf32>
    %390 = vector.broadcast %388 : vector<16x1xf32> to vector<16x256xf32>
    %391 = vector.broadcast %389 : vector<1x256xf32> to vector<16x256xf32>
    %392 = arith.mulf %390, %391 : vector<16x256xf32>
    %393 = arith.addf %387, %392 : vector<16x256xf32>
    %394 = vector.broadcast %1 : vector<16x1xf32> to vector<16x256xf32>
    %395 = arith.addf %393, %394 : vector<16x256xf32>
    %cst_17 = arith.constant 5.000000e-01 : f32
    %396 = vector.broadcast %cst_17 : f32 to vector<16x256xf32>
    %397 = arith.minimumf %395, %396 : vector<16x256xf32>
    %cst_18 = arith.constant 2.000000e+00 : f32
    %398 = vector.broadcast %cst_18 : f32 to vector<16x256xf32>
    %399 = arith.mulf %397, %398 : vector<16x256xf32>
    %400 = vector.broadcast %4 : vector<16x1xf32> to vector<16x256xf32>
    %401 = arith.addf %399, %400 : vector<16x256xf32>
    %c1_19 = arith.constant 1 : index
    %c0_20 = arith.constant 0 : index
    %c0_21 = arith.constant 0 : index
    %402 = vector.load %arg5[%c1_19, %c0_20, %c0_21] : memref<2x16x256xf32, #tpu.memory_space<vmem>>, vector<1x16x256xf32>
    %403 = vector.shape_cast %402 : vector<1x16x256xf32> to vector<16x256xf32>
    %404 = vector.shape_cast %401 : vector<16x256xf32> to vector<1x16x256xf32>
    tpu.vector_store %arg5[%c1_19, %c0_20, %c0_21], %404 {strides = array<i32>} : memref<2x16x256xf32, #tpu.memory_space<vmem>>, vector<1x16x256xf32>,
    return
  }
  func.func @transform_0(%arg0: i32) -> (i32, i32, i32) {
    %c0_i32 = arith.constant 0 : i32
    %c0_i32_0 = arith.constant 0 : i32
    %c0_i32_1 = arith.constant 0 : i32
    return %arg0, %c0_i32, %c0_i32_0 : i32, i32, i32
  }
  func.func @transform_1(%arg0: i32) -> (i32, i32) {
    %c0_i32 = arith.constant 0 : i32
    %c0_i32_0 = arith.constant 0 : i32
    %c0_i32_1 = arith.constant 0 : i32
    return %c0_i32, %c0_i32_0 : i32, i32
  }
  func.func @transform_2(%arg0: i32) -> (i32, i32) {
    %c0_i32 = arith.constant 0 : i32
    %c0_i32_0 = arith.constant 0 : i32
    %c0_i32_1 = arith.constant 0 : i32
    return %c0_i32, %c0_i32_0 : i32, i32
  }
  func.func @transform_3(%arg0: i32) -> (i32, i32) {
    %c0_i32 = arith.constant 0 : i32
    %c0_i32_0 = arith.constant 0 : i32
    %c0_i32_1 = arith.constant 0 : i32
    return %c0_i32, %c0_i32_0 : i32, i32
  }
  func.func @transform_4(%arg0: i32) -> (i32, i32, i32) {
    %c0_i32 = arith.constant 0 : i32
    %c0_i32_0 = arith.constant 0 : i32
    %c0_i32_1 = arith.constant 0 : i32
    return %arg0, %c0_i32, %c0_i32_0 : i32, i32, i32
  }
}

</mosaic_0001>

<llo_original>
// kernel: tpu_custom_call.1
$region0: #{tpu_custom_call.1}
  #allocation0 [shape = 'u32[]', space=smem, size = 0x4, offset = 0x4, fixed_abs, tag = 'smem constant byte address 0x4 - core index']
  #allocation1 [shape = 'u32[144,128]{1,0:T(1,128)}', space=vmem, size = 0x12000, scoped, tag = 'internal scratch']
  %s0 = inlined_call_operand.vmem [shape: f32[2,3,256], index: 0, kind: input, shape index: {}]
  %s1 = inlined_call_operand.vmem [shape: f32[16,27], index: 1, kind: input, shape index: {}]
  %s2 = inlined_call_operand.vmem [shape: f32[16,1], index: 2, kind: input, shape index: {}]
  %s3 = inlined_call_operand.vmem [shape: f32[16,1], index: 3, kind: input, shape index: {}]
  %s4 = inlined_call_operand.hbm [shape: f32[2,16,256], index: 4, kind: output, shape index: {}]
  %s5 = sld [smem:[#allocation0]]
  $region26: #{tpu_custom_call.1} parent=0
    _
  %s7 = ssub.s32 1, %s5
  %s8 = scalar_select 0, %s7, %s5
  $region1: #{tpu_custom_call.1} parent=0
    #allocation2 [shape = 'u8[32768]{0}', space=vmem, size = 0x8000, scoped, tag = 'output window, operand 0, single buffered']
    #allocation3 [shape = 's32[1]{0}', space=sflag, size = 0x4, scoped, tag = 'scoped memory for tpu_custom_call.1']
    %9 = vsyncpa [#allocation3], 0
    // Predicated region
    $region2: #{tpu_custom_call.1} parent=1 // pred_check
      _
    $region3: #{tpu_custom_call.1} parent=1 // pred_check_branch
      %11 = sbr.rel (0) target = $region5
    $region4: #{tpu_custom_call.1} parent=1 // pred_region
      _
    $region5: #{tpu_custom_call.1} parent=1 // pred_fallthru
      _
    // Predicated region
    $region6: #{tpu_custom_call.1} parent=1 // pred_check
      _
    $region7: #{tpu_custom_call.1} parent=1 // pred_check_branch
      %13 = sbr.rel (0) target = $region9
    $region8: #{tpu_custom_call.1} parent=1 // pred_region
      _
    $region9: #{tpu_custom_call.1} parent=1 // pred_fallthru
      _
    // Predicated region
    $region10: #{tpu_custom_call.1} parent=1 // pred_check
      _
    $region11: #{tpu_custom_call.1} parent=1 // pred_check_branch
      %15 = sbr.rel (0) target = $region13
    $region12: #{tpu_custom_call.1} parent=1 // pred_region
      _
    $region13: #{tpu_custom_call.1} parent=1 // pred_fallthru
      _
    // Predicated region
    $region14: #{tpu_custom_call.1} parent=1 // pred_check
      _
    $region15: #{tpu_custom_call.1} parent=1 // pred_check_branch
      %17 = sbr.rel (0) target = $region17
    $region16: #{tpu_custom_call.1} parent=1 // pred_region
      _
    $region17: #{tpu_custom_call.1} parent=1 // pred_fallthru
      _
    %v18 = vld [vmem:[%s1] sm:$0xff]
    %v19 = vld [vmem:[%s1 + $0x8] sm:$0xff]
    %v20 = vld [vmem:[%s2] sm:$0xff]
    %v21 = vld [vmem:[%s2 + $0x8] sm:$0xff]
    %v22 = vld [vmem:[%s3] sm:$0xff]
    %v23 = vld [vmem:[%s3 + $0x8] sm:$0xff]
    %v24 = vmul.f32 %v22, 2.0
    %v25 = vmul.f32 %v23, 2.0
    %v26 = vld [vmem:[%s0] sm:$0x77]
    %28 = vset.pattern.permute.xlu0 0
    %29 = vperm.xlu0 %28, %v18
    %v30 = vpop.permute.xlu0 %29
    %33 = vset.pattern.permute.xlu0 0
    %34 = vperm.xlu0 %33, %v19
    %v35 = vpop.permute.xlu0 %34
    %v38 = vlaneseq
    %v39 = vshrl.u32 %v38, 7
    %v40 = vsub.s32 0, %v39
    %v41 = vrot.slane %v26, %v40
    %v42 = vlaneseq
    %v43 = vshrl.u32 %v42, 7
    %v44 = vsub.s32 4, %v43
    %v45 = vrot.slane %v26, %v44
    %v48 = vlaneseq
    %v49 = vshrl.u32 %v48, 7
    %v50 = vsub.s32 0, %v49
    %v51 = vrot.slane %v41, %v50
    %v52 = vlaneseq
    %v53 = vshrl.u32 %v52, 7
    %v54 = vsub.s32 0, %v53
    %v55 = vrot.slane %v45, %v54
    %v56 = vmul.f32 %v30, %v51
    %v57 = vmul.f32 %v30, %v55
    %v58 = vmul.f32 %v35, %v51
    %v59 = vmul.f32 %v35, %v55
    %v60 = vadd.f32 %v56, 0.0
    %v61 = vadd.f32 %v57, 0.0
    %v62 = vadd.f32 %v58, 0.0
    %v63 = vadd.f32 %v59, 0.0
    %64 = vset.pattern.permute.xlu0 9
    %65 = vperm.xlu0 %64, %v18
    %v66 = vpop.permute.xlu0 %65
    %68 = vset.pattern.permute.xlu0 9
    %69 = vperm.xlu0 %68, %v19
    %v70 = vpop.permute.xlu0 %69
    %v72 = vlaneseq
    %v73 = vshrl.u32 %v72, 7
    %v74 = vsub.s32 1, %v73
    %v75 = vrot.slane %v26, %v74
    %v76 = vlaneseq
    %v77 = vshrl.u32 %v76, 7
    %v78 = vsub.s32 5, %v77
    %v79 = vrot.slane %v26, %v78
    %v82 = vlaneseq
    %v83 = vshrl.u32 %v82, 7
    %v84 = vsub.s32 1, %v83
    %v85 = vrot.slane %v75, %v84
    %v86 = vlaneseq
    %v87 = vshrl.u32 %v86, 7
    %v88 = vsub.s32 1, %v87
    %v89 = vrot.slane %v79, %v88
    %v90 = vmul.f32 %v66, %v85
    %v91 = vmul.f32 %v66, %v89
    %v92 = vmul.f32 %v70, %v85
    %v93 = vmul.f32 %v70, %v89
    %v94 = vadd.f32 %v60, %v90
    %v95 = vadd.f32 %v61, %v91
    %v96 = vadd.f32 %v62, %v92
    %v97 = vadd.f32 %v63, %v93
    %98 = vset.pattern.permute.xlu0 18
    %99 = vperm.xlu0 %98, %v18
    %v100 = vpop.permute.xlu0 %99
    %102 = vset.pattern.permute.xlu0 18
    %103 = vperm.xlu0 %102, %v19
    %v104 = vpop.permute.xlu0 %103
    %v106 = vlaneseq
    %v107 = vshrl.u32 %v106, 7
    %v108 = vsub.s32 2, %v107
    %v109 = vrot.slane %v26, %v108
    %v110 = vlaneseq
    %v111 = vshrl.u32 %v110, 7
    %v112 = vsub.s32 6, %v111
    %v113 = vrot.slane %v26, %v112
    %v116 = vlaneseq
    %v117 = vshrl.u32 %v116, 7
    %v118 = vsub.s32 2, %v117
    %v119 = vrot.slane %v109, %v118
    %v120 = vlaneseq
    %v121 = vshrl.u32 %v120, 7
    %v122 = vsub.s32 2, %v121
    %v123 = vrot.slane %v113, %v122
    %v124 = vmul.f32 %v100, %v119
    %v125 = vmul.f32 %v100, %v123
    %v126 = vmul.f32 %v104, %v119
    %v127 = vmul.f32 %v104, %v123
    %v128 = vadd.f32 %v94, %v124
    %v129 = vadd.f32 %v95, %v125
    %v130 = vadd.f32 %v96, %v126
    %v131 = vadd.f32 %v97, %v127
    %v132 = vcombine.high %v26, %v26
    %133 = vrot.lane.b32.xlu0 %v26, 127
    %v134 = vpop.permute.xlu0 %133
    %135 = vrot.lane.b32.xlu0 %v132, 127
    %v136 = vpop.permute.xlu0 %135
    %vm137 = vcmask 1039360
    %v138 = vsel %vm137, %v134, %v136
    %v142 = vsel %vm137, %v136, %v134
    %143 = vset.pattern.permute.xlu0 1
    %144 = vperm.xlu0 %143, %v18
    %v145 = vpop.permute.xlu0 %144
    %147 = vset.pattern.permute.xlu0 1
    %148 = vperm.xlu0 %147, %v19
    %v149 = vpop.permute.xlu0 %148
    %v151 = vlaneseq
    %v152 = vshrl.u32 %v151, 7
    %v153 = vsub.s32 0, %v152
    %v154 = vrot.slane %v138, %v153
    %v155 = vlaneseq
    %v156 = vshrl.u32 %v155, 7
    %v157 = vsub.s32 0, %v156
    %v158 = vrot.slane %v142, %v157
    %v159 = vmul.f32 %v145, %v154
    %v160 = vmul.f32 %v145, %v158
    %v161 = vmul.f32 %v149, %v154
    %v162 = vmul.f32 %v149, %v158
    %v163 = vadd.f32 %v128, %v159
    %v164 = vadd.f32 %v129, %v160
    %v165 = vadd.f32 %v130, %v161
    %v166 = vadd.f32 %v131, %v162
    %167 = vset.pattern.permute.xlu0 10
    %168 = vperm.xlu0 %167, %v18
    %v169 = vpop.permute.xlu0 %168
    %171 = vset.pattern.permute.xlu0 10
    %172 = vperm.xlu0 %171, %v19
    %v173 = vpop.permute.xlu0 %172
    %v175 = vlaneseq
    %v176 = vshrl.u32 %v175, 7
    %v177 = vsub.s32 1, %v176
    %v178 = vrot.slane %v138, %v177
    %v179 = vlaneseq
    %v180 = vshrl.u32 %v179, 7
    %v181 = vsub.s32 1, %v180
    %v182 = vrot.slane %v142, %v181
    %v183 = vmul.f32 %v169, %v178
    %v184 = vmul.f32 %v169, %v182
    %v185 = vmul.f32 %v173, %v178
    %v186 = vmul.f32 %v173, %v182
    %v187 = vadd.f32 %v163, %v183
    %v188 = vadd.f32 %v164, %v184
    %v189 = vadd.f32 %v165, %v185
    %v190 = vadd.f32 %v166, %v186
    %191 = vset.pattern.permute.xlu0 19
    %192 = vperm.xlu0 %191, %v18
    %v193 = vpop.permute.xlu0 %192
    %195 = vset.pattern.permute.xlu0 19
    %196 = vperm.xlu0 %195, %v19
    %v197 = vpop.permute.xlu0 %196
    %v199 = vlaneseq
    %v200 = vshrl.u32 %v199, 7
    %v201 = vsub.s32 2, %v200
    %v202 = vrot.slane %v138, %v201
    %v203 = vlaneseq
    %v204 = vshrl.u32 %v203, 7
    %v205 = vsub.s32 2, %v204
    %v206 = vrot.slane %v142, %v205
    %v207 = vmul.f32 %v193, %v202
    %v208 = vmul.f32 %v193, %v206
    %v209 = vmul.f32 %v197, %v202
    %v210 = vmul.f32 %v197, %v206
    %v211 = vadd.f32 %v187, %v207
    %v212 = vadd.f32 %v188, %v208
    %v213 = vadd.f32 %v189, %v209
    %v214 = vadd.f32 %v190, %v210
    %215 = vrot.lane.b32.xlu0 %v26, 126
    %v216 = vpop.permute.xlu0 %215
    %217 = vrot.lane.b32.xlu0 %v132, 126
    %v218 = vpop.permute.xlu0 %217
    %vm219 = vcmask 1031168
    %v220 = vsel %vm219, %v216, %v218
    %v224 = vsel %vm219, %v218, %v216
    %225 = vset.pattern.permute.xlu0 2
    %226 = vperm.xlu0 %225, %v18
    %v227 = vpop.permute.xlu0 %226
    %229 = vset.pattern.permute.xlu0 2
    %230 = vperm.xlu0 %229, %v19
    %v231 = vpop.permute.xlu0 %230
    %v233 = vlaneseq
    %v234 = vshrl.u32 %v233, 7
    %v235 = vsub.s32 0, %v234
    %v236 = vrot.slane %v220, %v235
    %v237 = vlaneseq
    %v238 = vshrl.u32 %v237, 7
    %v239 = vsub.s32 0, %v238
    %v240 = vrot.slane %v224, %v239
    %v241 = vmul.f32 %v227, %v236
    %v242 = vmul.f32 %v227, %v240
    %v243 = vmul.f32 %v231, %v236
    %v244 = vmul.f32 %v231, %v240
    %v245 = vadd.f32 %v211, %v241
    %v246 = vadd.f32 %v212, %v242
    %v247 = vadd.f32 %v213, %v243
    %v248 = vadd.f32 %v214, %v244
    %249 = vset.pattern.permute.xlu0 11
    %250 = vperm.xlu0 %249, %v18
    %v251 = vpop.permute.xlu0 %250
    %253 = vset.pattern.permute.xlu0 11
    %254 = vperm.xlu0 %253, %v19
    %v255 = vpop.permute.xlu0 %254
    %v257 = vlaneseq
    %v258 = vshrl.u32 %v257, 7
    %v259 = vsub.s32 1, %v258
    %v260 = vrot.slane %v220, %v259
    %v261 = vlaneseq
    %v262 = vshrl.u32 %v261, 7
    %v263 = vsub.s32 1, %v262
    %v264 = vrot.slane %v224, %v263
    %v265 = vmul.f32 %v251, %v260
    %v266 = vmul.f32 %v251, %v264
    %v267 = vmul.f32 %v255, %v260
    %v268 = vmul.f32 %v255, %v264
    %v269 = vadd.f32 %v245, %v265
    %v270 = vadd.f32 %v246, %v266
    %v271 = vadd.f32 %v247, %v267
    %v272 = vadd.f32 %v248, %v268
    %273 = vset.pattern.permute.xlu0 20
    %274 = vperm.xlu0 %273, %v18
    %v275 = vpop.permute.xlu0 %274
    %277 = vset.pattern.permute.xlu0 20
    %278 = vperm.xlu0 %277, %v19
    %v279 = vpop.permute.xlu0 %278
    %v281 = vlaneseq
    %v282 = vshrl.u32 %v281, 7
    %v283 = vsub.s32 2, %v282
    %v284 = vrot.slane %v220, %v283
    %v285 = vlaneseq
    %v286 = vshrl.u32 %v285, 7
    %v287 = vsub.s32 2, %v286
    %v288 = vrot.slane %v224, %v287
    %v289 = vmul.f32 %v275, %v284
    %v290 = vmul.f32 %v275, %v288
    %v291 = vmul.f32 %v279, %v284
    %v292 = vmul.f32 %v279, %v288
    %v293 = vadd.f32 %v269, %v289
    %v294 = vadd.f32 %v270, %v290
    %v295 = vadd.f32 %v271, %v291
    %v296 = vadd.f32 %v272, %v292
    %297 = vrot.lane.b32.xlu0 %v26, 112
    %v298 = vpop.permute.xlu0 %297
    %299 = vrot.lane.b32.xlu0 %v132, 112
    %v300 = vpop.permute.xlu0 %299
    %vm301 = vcmask 916480
    %v302 = vsel %vm301, %v298, %v300
    %v306 = vsel %vm301, %v300, %v298
    %307 = vset.pattern.permute.xlu0 3
    %308 = vperm.xlu0 %307, %v18
    %v309 = vpop.permute.xlu0 %308
    %311 = vset.pattern.permute.xlu0 3
    %312 = vperm.xlu0 %311, %v19
    %v313 = vpop.permute.xlu0 %312
    %v315 = vlaneseq
    %v316 = vshrl.u32 %v315, 7
    %v317 = vsub.s32 0, %v316
    %v318 = vrot.slane %v302, %v317
    %v319 = vlaneseq
    %v320 = vshrl.u32 %v319, 7
    %v321 = vsub.s32 0, %v320
    %v322 = vrot.slane %v306, %v321
    %v323 = vmul.f32 %v309, %v318
    %v324 = vmul.f32 %v309, %v322
    %v325 = vmul.f32 %v313, %v318
    %v326 = vmul.f32 %v313, %v322
    %v327 = vadd.f32 %v293, %v323
    %v328 = vadd.f32 %v294, %v324
    %v329 = vadd.f32 %v295, %v325
    %v330 = vadd.f32 %v296, %v326
    %331 = vset.pattern.permute.xlu0 12
    %332 = vperm.xlu0 %331, %v18
    %v333 = vpop.permute.xlu0 %332
    %335 = vset.pattern.permute.xlu0 12
    %336 = vperm.xlu0 %335, %v19
    %v337 = vpop.permute.xlu0 %336
    %v339 = vlaneseq
    %v340 = vshrl.u32 %v339, 7
    %v341 = vsub.s32 1, %v340
    %v342 = vrot.slane %v302, %v341
    %v343 = vlaneseq
    %v344 = vshrl.u32 %v343, 7
    %v345 = vsub.s32 1, %v344
    %v346 = vrot.slane %v306, %v345
    %v347 = vmul.f32 %v333, %v342
    %v348 = vmul.f32 %v333, %v346
    %v349 = vmul.f32 %v337, %v342
    %v350 = vmul.f32 %v337, %v346
    %v351 = vadd.f32 %v327, %v347
    %v352 = vadd.f32 %v328, %v348
    %v353 = vadd.f32 %v329, %v349
    %v354 = vadd.f32 %v330, %v350
    %355 = vset.pattern.permute.xlu0 21
    %356 = vperm.xlu0 %355, %v18
    %v357 = vpop.permute.xlu0 %356
    %359 = vset.pattern.permute.xlu0 21
    %360 = vperm.xlu0 %359, %v19
    %v361 = vpop.permute.xlu0 %360
    %v363 = vlaneseq
    %v364 = vshrl.u32 %v363, 7
    %v365 = vsub.s32 2, %v364
    %v366 = vrot.slane %v302, %v365
    %v367 = vlaneseq
    %v368 = vshrl.u32 %v367, 7
    %v369 = vsub.s32 2, %v368
    %v370 = vrot.slane %v306, %v369
    %v371 = vmul.f32 %v357, %v366
    %v372 = vmul.f32 %v357, %v370
    %v373 = vmul.f32 %v361, %v366
    %v374 = vmul.f32 %v361, %v370
    %v375 = vadd.f32 %v351, %v371
    %v376 = vadd.f32 %v352, %v372
    %v377 = vadd.f32 %v353, %v373
    %v378 = vadd.f32 %v354, %v374
    %379 = vrot.lane.b32.xlu0 %v26, 111
    %v380 = vpop.permute.xlu0 %379
    %381 = vrot.lane.b32.xlu0 %v132, 111
    %v382 = vpop.permute.xlu0 %381
    %vm383 = vcmask 908288
    %v384 = vsel %vm383, %v380, %v382
    %v388 = vsel %vm383, %v382, %v380
    %389 = vset.pattern.permute.xlu0 4
    %390 = vperm.xlu0 %389, %v18
    %v391 = vpop.permute.xlu0 %390
    %393 = vset.pattern.permute.xlu0 4
    %394 = vperm.xlu0 %393, %v19
    %v395 = vpop.permute.xlu0 %394
    %v397 = vlaneseq
    %v398 = vshrl.u32 %v397, 7
    %v399 = vsub.s32 0, %v398
    %v400 = vrot.slane %v384, %v399
    %v401 = vlaneseq
    %v402 = vshrl.u32 %v401, 7
    %v403 = vsub.s32 0, %v402
    %v404 = vrot.slane %v388, %v403
    %v405 = vmul.f32 %v391, %v400
    %v406 = vmul.f32 %v391, %v404
    %v407 = vmul.f32 %v395, %v400
    %v408 = vmul.f32 %v395, %v404
    %v409 = vadd.f32 %v375, %v405
    %v410 = vadd.f32 %v376, %v406
    %v411 = vadd.f32 %v377, %v407
    %v412 = vadd.f32 %v378, %v408
    %413 = vset.pattern.permute.xlu0 13
    %414 = vperm.xlu0 %413, %v18
    %v415 = vpop.permute.xlu0 %414
    %417 = vset.pattern.permute.xlu0 13
    %418 = vperm.xlu0 %417, %v19
    %v419 = vpop.permute.xlu0 %418
    %v421 = vlaneseq
    %v422 = vshrl.u32 %v421, 7
    %v423 = vsub.s32 1, %v422
    %v424 = vrot.slane %v384, %v423
    %v425 = vlaneseq
    %v426 = vshrl.u32 %v425, 7
    %v427 = vsub.s32 1, %v426
    %v428 = vrot.slane %v388, %v427
    %v429 = vmul.f32 %v415, %v424
    %v430 = vmul.f32 %v415, %v428
    %v431 = vmul.f32 %v419, %v424
    %v432 = vmul.f32 %v419, %v428
    %v433 = vadd.f32 %v409, %v429
    %v434 = vadd.f32 %v410, %v430
    %v435 = vadd.f32 %v411, %v431
    %v436 = vadd.f32 %v412, %v432
    %437 = vset.pattern.permute.xlu0 22
    %438 = vperm.xlu0 %437, %v18
    %v439 = vpop.permute.xlu0 %438
    %441 = vset.pattern.permute.xlu0 22
    %442 = vperm.xlu0 %441, %v19
    %v443 = vpop.permute.xlu0 %442
    %v445 = vlaneseq
    %v446 = vshrl.u32 %v445, 7
    %v447 = vsub.s32 2, %v446
    %v448 = vrot.slane %v384, %v447
    %v449 = vlaneseq
    %v450 = vshrl.u32 %v449, 7
    %v451 = vsub.s32 2, %v450
    %v452 = vrot.slane %v388, %v451
    %v453 = vmul.f32 %v439, %v448
    %v454 = vmul.f32 %v439, %v452
    %v455 = vmul.f32 %v443, %v448
    %v456 = vmul.f32 %v443, %v452
    %v457 = vadd.f32 %v433, %v453
    %v458 = vadd.f32 %v434, %v454
    %v459 = vadd.f32 %v435, %v455
    %v460 = vadd.f32 %v436, %v456
    %461 = vrot.lane.b32.xlu0 %v26, 110
    %v462 = vpop.permute.xlu0 %461
    %463 = vrot.lane.b32.xlu0 %v132, 110
    %v464 = vpop.permute.xlu0 %463
    %vm465 = vcmask 900096
    %v466 = vsel %vm465, %v462, %v464
    %v470 = vsel %vm465, %v464, %v462
    %471 = vset.pattern.permute.xlu0 5
    %472 = vperm.xlu0 %471, %v18
    %v473 = vpop.permute.xlu0 %472
    %475 = vset.pattern.permute.xlu0 5
    %476 = vperm.xlu0 %475, %v19
    %v477 = vpop.permute.xlu0 %476
    %v479 = vlaneseq
    %v480 = vshrl.u32 %v479, 7
    %v481 = vsub.s32 0, %v480
    %v482 = vrot.slane %v466, %v481
    %v483 = vlaneseq
    %v484 = vshrl.u32 %v483, 7
    %v485 = vsub.s32 0, %v484
    %v486 = vrot.slane %v470, %v485
    %v487 = vmul.f32 %v473, %v482
    %v488 = vmul.f32 %v473, %v486
    %v489 = vmul.f32 %v477, %v482
    %v490 = vmul.f32 %v477, %v486
    %v491 = vadd.f32 %v457, %v487
    %v492 = vadd.f32 %v458, %v488
    %v493 = vadd.f32 %v459, %v489
    %v494 = vadd.f32 %v460, %v490
    %495 = vset.pattern.permute.xlu0 14
    %496 = vperm.xlu0 %495, %v18
    %v497 = vpop.permute.xlu0 %496
    %499 = vset.pattern.permute.xlu0 14
    %500 = vperm.xlu0 %499, %v19
    %v501 = vpop.permute.xlu0 %500
    %v503 = vlaneseq
    %v504 = vshrl.u32 %v503, 7
    %v505 = vsub.s32 1, %v504
    %v506 = vrot.slane %v466, %v505
    %v507 = vlaneseq
    %v508 = vshrl.u32 %v507, 7
    %v509 = vsub.s32 1, %v508
    %v510 = vrot.slane %v470, %v509
    %v511 = vmul.f32 %v497, %v506
    %v512 = vmul.f32 %v497, %v510
    %v513 = vmul.f32 %v501, %v506
    %v514 = vmul.f32 %v501, %v510
    %v515 = vadd.f32 %v491, %v511
    %v516 = vadd.f32 %v492, %v512
    %v517 = vadd.f32 %v493, %v513
    %v518 = vadd.f32 %v494, %v514
    %519 = vset.pattern.permute.xlu0 23
    %520 = vperm.xlu0 %519, %v18
    %v521 = vpop.permute.xlu0 %520
    %523 = vset.pattern.permute.xlu0 23
    %524 = vperm.xlu0 %523, %v19
    %v525 = vpop.permute.xlu0 %524
    %v527 = vlaneseq
    %v528 = vshrl.u32 %v527, 7
    %v529 = vsub.s32 2, %v528
    %v530 = vrot.slane %v466, %v529
    %v531 = vlaneseq
    %v532 = vshrl.u32 %v531, 7
    %v533 = vsub.s32 2, %v532
    %v534 = vrot.slane %v470, %v533
    %v535 = vmul.f32 %v521, %v530
    %v536 = vmul.f32 %v521, %v534
    %v537 = vmul.f32 %v525, %v530
    %v538 = vmul.f32 %v525, %v534
    %v539 = vadd.f32 %v515, %v535
    %v540 = vadd.f32 %v516, %v536
    %v541 = vadd.f32 %v517, %v537
    %v542 = vadd.f32 %v518, %v538
    %543 = vrot.lane.b32.xlu0 %v26, 96
    %v544 = vpop.permute.xlu0 %543
    %545 = vrot.lane.b32.xlu0 %v132, 96
    %v546 = vpop.permute.xlu0 %545
    %vm547 = vcmask 785408
    %v548 = vsel %vm547, %v544, %v546
    %v552 = vsel %vm547, %v546, %v544
    %553 = vset.pattern.permute.xlu0 6
    %554 = vperm.xlu0 %553, %v18
    %v555 = vpop.permute.xlu0 %554
    %557 = vset.pattern.permute.xlu0 6
    %558 = vperm.xlu0 %557, %v19
    %v559 = vpop.permute.xlu0 %558
    %v561 = vlaneseq
    %v562 = vshrl.u32 %v561, 7
    %v563 = vsub.s32 0, %v562
    %v564 = vrot.slane %v548, %v563
    %v565 = vlaneseq
    %v566 = vshrl.u32 %v565, 7
    %v567 = vsub.s32 0, %v566
    %v568 = vrot.slane %v552, %v567
    %v569 = vmul.f32 %v555, %v564
    %v570 = vmul.f32 %v555, %v568
    %v571 = vmul.f32 %v559, %v564
    %v572 = vmul.f32 %v559, %v568
    %v573 = vadd.f32 %v539, %v569
    %v574 = vadd.f32 %v540, %v570
    %v575 = vadd.f32 %v541, %v571
    %v576 = vadd.f32 %v542, %v572
    %577 = vset.pattern.permute.xlu0 15
    %578 = vperm.xlu0 %577, %v18
    %v579 = vpop.permute.xlu0 %578
    %581 = vset.pattern.permute.xlu0 15
    %582 = vperm.xlu0 %581, %v19
    %v583 = vpop.permute.xlu0 %582
    %v585 = vlaneseq
    %v586 = vshrl.u32 %v585, 7
    %v587 = vsub.s32 1, %v586
    %v588 = vrot.slane %v548, %v587
    %v589 = vlaneseq
    %v590 = vshrl.u32 %v589, 7
    %v591 = vsub.s32 1, %v590
    %v592 = vrot.slane %v552, %v591
    %v593 = vmul.f32 %v579, %v588
    %v594 = vmul.f32 %v579, %v592
    %v595 = vmul.f32 %v583, %v588
    %v596 = vmul.f32 %v583, %v592
    %v597 = vadd.f32 %v573, %v593
    %v598 = vadd.f32 %v574, %v594
    %v599 = vadd.f32 %v575, %v595
    %v600 = vadd.f32 %v576, %v596
    %601 = vset.pattern.permute.xlu0 24
    %602 = vperm.xlu0 %601, %v18
    %v603 = vpop.permute.xlu0 %602
    %605 = vset.pattern.permute.xlu0 24
    %606 = vperm.xlu0 %605, %v19
    %v607 = vpop.permute.xlu0 %606
    %v609 = vlaneseq
    %v610 = vshrl.u32 %v609, 7
    %v611 = vsub.s32 2, %v610
    %v612 = vrot.slane %v548, %v611
    %v613 = vlaneseq
    %v614 = vshrl.u32 %v613, 7
    %v615 = vsub.s32 2, %v614
    %v616 = vrot.slane %v552, %v615
    %v617 = vmul.f32 %v603, %v612
    %v618 = vmul.f32 %v603, %v616
    %v619 = vmul.f32 %v607, %v612
    %v620 = vmul.f32 %v607, %v616
    %v621 = vadd.f32 %v597, %v617
    %v622 = vadd.f32 %v598, %v618
    %v623 = vadd.f32 %v599, %v619
    %v624 = vadd.f32 %v600, %v620
    %625 = vrot.lane.b32.xlu0 %v26, 95
    %v626 = vpop.permute.xlu0 %625
    %627 = vrot.lane.b32.xlu0 %v132, 95
    %v628 = vpop.permute.xlu0 %627
    %vm629 = vcmask 777216
    %v630 = vsel %vm629, %v626, %v628
    %v634 = vsel %vm629, %v628, %v626
    %635 = vset.pattern.permute.xlu0 7
    %636 = vperm.xlu0 %635, %v18
    %v637 = vpop.permute.xlu0 %636
    %639 = vset.pattern.permute.xlu0 7
    %640 = vperm.xlu0 %639, %v19
    %v641 = vpop.permute.xlu0 %640
    %v643 = vlaneseq
    %v644 = vshrl.u32 %v643, 7
    %v645 = vsub.s32 0, %v644
    %v646 = vrot.slane %v630, %v645
    %v647 = vlaneseq
    %v648 = vshrl.u32 %v647, 7
    %v649 = vsub.s32 0, %v648
    %v650 = vrot.slane %v634, %v649
    %v651 = vmul.f32 %v637, %v646
    %v652 = vmul.f32 %v637, %v650
    %v653 = vmul.f32 %v641, %v646
    %v654 = vmul.f32 %v641, %v650
    %v655 = vadd.f32 %v621, %v651
    %v656 = vadd.f32 %v622, %v652
    %v657 = vadd.f32 %v623, %v653
    %v658 = vadd.f32 %v624, %v654
    %659 = vset.pattern.permute.xlu0 16
    %660 = vperm.xlu0 %659, %v18
    %v661 = vpop.permute.xlu0 %660
    %663 = vset.pattern.permute.xlu0 16
    %664 = vperm.xlu0 %663, %v19
    %v665 = vpop.permute.xlu0 %664
    %v667 = vlaneseq
    %v668 = vshrl.u32 %v667, 7
    %v669 = vsub.s32 1, %v668
    %v670 = vrot.slane %v630, %v669
    %v671 = vlaneseq
    %v672 = vshrl.u32 %v671, 7
    %v673 = vsub.s32 1, %v672
    %v674 = vrot.slane %v634, %v673
    %v675 = vmul.f32 %v661, %v670
    %v676 = vmul.f32 %v661, %v674
    %v677 = vmul.f32 %v665, %v670
    %v678 = vmul.f32 %v665, %v674
    %v679 = vadd.f32 %v655, %v675
    %v680 = vadd.f32 %v656, %v676
    %v681 = vadd.f32 %v657, %v677
    %v682 = vadd.f32 %v658, %v678
    %683 = vset.pattern.permute.xlu0 25
    %684 = vperm.xlu0 %683, %v18
    %v685 = vpop.permute.xlu0 %684
    %687 = vset.pattern.permute.xlu0 25
    %688 = vperm.xlu0 %687, %v19
    %v689 = vpop.permute.xlu0 %688
    %v691 = vlaneseq
    %v692 = vshrl.u32 %v691, 7
    %v693 = vsub.s32 2, %v692
    %v694 = vrot.slane %v630, %v693
    %v695 = vlaneseq
    %v696 = vshrl.u32 %v695, 7
    %v697 = vsub.s32 2, %v696
    %v698 = vrot.slane %v634, %v697
    %v699 = vmul.f32 %v685, %v694
    %v700 = vmul.f32 %v685, %v698
    %v701 = vmul.f32 %v689, %v694
    %v702 = vmul.f32 %v689, %v698
    %v703 = vadd.f32 %v679, %v699
    %v704 = vadd.f32 %v680, %v700
    %v705 = vadd.f32 %v681, %v701
    %v706 = vadd.f32 %v682, %v702
    %707 = vrot.lane.b32.xlu0 %v26, 94
    %v708 = vpop.permute.xlu0 %707
    %709 = vrot.lane.b32.xlu0 %v132, 94
    %v710 = vpop.permute.xlu0 %709
    %vm711 = vcmask 769024
    %v712 = vsel %vm711, %v708, %v710
    %v716 = vsel %vm711, %v710, %v708
    %717 = vset.pattern.permute.xlu0 8
    %718 = vperm.xlu0 %717, %v18
    %v719 = vpop.permute.xlu0 %718
    %721 = vset.pattern.permute.xlu0 8
    %722 = vperm.xlu0 %721, %v19
    %v723 = vpop.permute.xlu0 %722
    %v725 = vlaneseq
    %v726 = vshrl.u32 %v725, 7
    %v727 = vsub.s32 0, %v726
    %v728 = vrot.slane %v712, %v727
    %v729 = vlaneseq
    %v730 = vshrl.u32 %v729, 7
    %v731 = vsub.s32 0, %v730
    %v732 = vrot.slane %v716, %v731
    %v733 = vmul.f32 %v719, %v728
    %v734 = vmul.f32 %v719, %v732
    %v735 = vmul.f32 %v723, %v728
    %v736 = vmul.f32 %v723, %v732
    %v737 = vadd.f32 %v703, %v733
    %v738 = vadd.f32 %v704, %v734
    %v739 = vadd.f32 %v705, %v735
    %v740 = vadd.f32 %v706, %v736
    %741 = vset.pattern.permute.xlu0 17
    %742 = vperm.xlu0 %741, %v18
    %v743 = vpop.permute.xlu0 %742
    %745 = vset.pattern.permute.xlu0 17
    %746 = vperm.xlu0 %745, %v19
    %v747 = vpop.permute.xlu0 %746
    %v749 = vlaneseq
    %v750 = vshrl.u32 %v749, 7
    %v751 = vsub.s32 1, %v750
    %v752 = vrot.slane %v712, %v751
    %v753 = vlaneseq
    %v754 = vshrl.u32 %v753, 7
    %v755 = vsub.s32 1, %v754
    %v756 = vrot.slane %v716, %v755
    %v757 = vmul.f32 %v743, %v752
    %v758 = vmul.f32 %v743, %v756
    %v759 = vmul.f32 %v747, %v752
    %v760 = vmul.f32 %v747, %v756
    %v761 = vadd.f32 %v737, %v757
    %v762 = vadd.f32 %v738, %v758
    %v763 = vadd.f32 %v739, %v759
    %v764 = vadd.f32 %v740, %v760
    %765 = vset.pattern.permute.xlu0 26
    %766 = vperm.xlu0 %765, %v18
    %v767 = vpop.permute.xlu0 %766
    %769 = vset.pattern.permute.xlu0 26
    %770 = vperm.xlu0 %769, %v19
    %v771 = vpop.permute.xlu0 %770
    %v773 = vlaneseq
    %v774 = vshrl.u32 %v773, 7
    %v775 = vsub.s32 2, %v774
    %v776 = vrot.slane %v712, %v775
    %v777 = vlaneseq
    %v778 = vshrl.u32 %v777, 7
    %v779 = vsub.s32 2, %v778
    %v780 = vrot.slane %v716, %v779
    %v781 = vmul.f32 %v767, %v776
    %v782 = vmul.f32 %v767, %v780
    %v783 = vmul.f32 %v771, %v776
    %v784 = vmul.f32 %v771, %v780
    %v785 = vadd.f32 %v761, %v781
    %v786 = vadd.f32 %v762, %v782
    %v787 = vadd.f32 %v763, %v783
    %v788 = vadd.f32 %v764, %v784
    %790 = vset.pattern.permute.xlu0 0
    %791 = vperm.xlu0 %790, %v20
    %v792 = vpop.permute.xlu0 %791
    %795 = vset.pattern.permute.xlu0 0
    %796 = vperm.xlu0 %795, %v21
    %v797 = vpop.permute.xlu0 %796
    %v799 = vadd.f32 %v785, %v792
    %v800 = vadd.f32 %v786, %v792
    %v801 = vadd.f32 %v787, %v797
    %v802 = vadd.f32 %v788, %v797
    %v803 = vmin.f32 %v799, 0.5
    %v804 = vmin.f32 %v800, 0.5
    %v805 = vmin.f32 %v801, 0.5
    %v806 = vmin.f32 %v802, 0.5
    %v807 = vmul.f32 %v803, 2.0
    %v808 = vmul.f32 %v804, 2.0
    %v809 = vmul.f32 %v805, 2.0
    %v810 = vmul.f32 %v806, 2.0
    %812 = vset.pattern.permute.xlu0 0
    %813 = vperm.xlu0 %812, %v24
    %v814 = vpop.permute.xlu0 %813
    %817 = vset.pattern.permute.xlu0 0
    %818 = vperm.xlu0 %817, %v25
    %v819 = vpop.permute.xlu0 %818
    %v821 = vadd.f32 %v807, %v814
    %v822 = vadd.f32 %v808, %v814
    %v823 = vadd.f32 %v809, %v819
    %v824 = vadd.f32 %v810, %v819
    %825 = vst [vmem:[#allocation2] sm:$0xff] %v821
    %826 = vst [vmem:[#allocation2 + $0x8] sm:$0xff] %v822
    %827 = vst [vmem:[#allocation2 + $0x10] sm:$0xff] %v823
    %828 = vst [vmem:[#allocation2 + $0x18] sm:$0xff] %v824
    %s829 = scalar_lea.vmem %s0, 8
    %v830 = vld [vmem:[%s829] sm:$0x77]
    %v832 = vlaneseq
    %v833 = vshrl.u32 %v832, 7
    %v834 = vsub.s32 0, %v833
    %v835 = vrot.slane %v830, %v834
    %v836 = vlaneseq
    %v837 = vshrl.u32 %v836, 7
    %v838 = vsub.s32 4, %v837
    %v839 = vrot.slane %v830, %v838
    %v842 = vlaneseq
    %v843 = vshrl.u32 %v842, 7
    %v844 = vsub.s32 0, %v843
    %v845 = vrot.slane %v835, %v844
    %v846 = vlaneseq
    %v847 = vshrl.u32 %v846, 7
    %v848 = vsub.s32 0, %v847
    %v849 = vrot.slane %v839, %v848
    %v850 = vmul.f32 %v30, %v845
    %v851 = vmul.f32 %v30, %v849
    %v852 = vmul.f32 %v35, %v845
    %v853 = vmul.f32 %v35, %v849
    %v854 = vadd.f32 %v850, 0.0
    %v855 = vadd.f32 %v851, 0.0
    %v856 = vadd.f32 %v852, 0.0
    %v857 = vadd.f32 %v853, 0.0
    %v858 = vlaneseq
    %v859 = vshrl.u32 %v858, 7
    %v860 = vsub.s32 1, %v859
    %v861 = vrot.slane %v830, %v860
    %v862 = vlaneseq
    %v863 = vshrl.u32 %v862, 7
    %v864 = vsub.s32 5, %v863
    %v865 = vrot.slane %v830, %v864
    %v868 = vlaneseq
    %v869 = vshrl.u32 %v868, 7
    %v870 = vsub.s32 1, %v869
    %v871 = vrot.slane %v861, %v870
    %v872 = vlaneseq
    %v873 = vshrl.u32 %v872, 7
    %v874 = vsub.s32 1, %v873
    %v875 = vrot.slane %v865, %v874
    %v876 = vmul.f32 %v66, %v871
    %v877 = vmul.f32 %v66, %v875
    %v878 = vmul.f32 %v70, %v871
    %v879 = vmul.f32 %v70, %v875
    %v880 = vadd.f32 %v854, %v876
    %v881 = vadd.f32 %v855, %v877
    %v882 = vadd.f32 %v856, %v878
    %v883 = vadd.f32 %v857, %v879
    %v884 = vlaneseq
    %v885 = vshrl.u32 %v884, 7
    %v886 = vsub.s32 2, %v885
    %v887 = vrot.slane %v830, %v886
    %v888 = vlaneseq
    %v889 = vshrl.u32 %v888, 7
    %v890 = vsub.s32 6, %v889
    %v891 = vrot.slane %v830, %v890
    %v894 = vlaneseq
    %v895 = vshrl.u32 %v894, 7
    %v896 = vsub.s32 2, %v895
    %v897 = vrot.slane %v887, %v896
    %v898 = vlaneseq
    %v899 = vshrl.u32 %v898, 7
    %v900 = vsub.s32 2, %v899
    %v901 = vrot.slane %v891, %v900
    %v902 = vmul.f32 %v100, %v897
    %v903 = vmul.f32 %v100, %v901
    %v904 = vmul.f32 %v104, %v897
    %v905 = vmul.f32 %v104, %v901
    %v906 = vadd.f32 %v880, %v902
    %v907 = vadd.f32 %v881, %v903
    %v908 = vadd.f32 %v882, %v904
    %v909 = vadd.f32 %v883, %v905
    %v910 = vcombine.high %v830, %v830
    %911 = vrot.lane.b32.xlu0 %v830, 127
    %v912 = vpop.permute.xlu0 %911
    %913 = vrot.lane.b32.xlu0 %v910, 127
    %v914 = vpop.permute.xlu0 %913
    %v915 = vsel %vm137, %v912, %v914
    %v919 = vsel %vm137, %v914, %v912
    %v920 = vlaneseq
    %v921 = vshrl.u32 %v920, 7
    %v922 = vsub.s32 0, %v921
    %v923 = vrot.slane %v915, %v922
    %v924 = vlaneseq
    %v925 = vshrl.u32 %v924, 7
    %v926 = vsub.s32 0, %v925
    %v927 = vrot.slane %v919, %v926
    %v928 = vmul.f32 %v145, %v923
    %v929 = vmul.f32 %v145, %v927
    %v930 = vmul.f32 %v149, %v923
    %v931 = vmul.f32 %v149, %v927
    %v932 = vadd.f32 %v906, %v928
    %v933 = vadd.f32 %v907, %v929
    %v934 = vadd.f32 %v908, %v930
    %v935 = vadd.f32 %v909, %v931
    %v936 = vlaneseq
    %v937 = vshrl.u32 %v936, 7
    %v938 = vsub.s32 1, %v937
    %v939 = vrot.slane %v915, %v938
    %v940 = vlaneseq
    %v941 = vshrl.u32 %v940, 7
    %v942 = vsub.s32 1, %v941
    %v943 = vrot.slane %v919, %v942
    %v944 = vmul.f32 %v169, %v939
    %v945 = vmul.f32 %v169, %v943
    %v946 = vmul.f32 %v173, %v939
    %v947 = vmul.f32 %v173, %v943
    %v948 = vadd.f32 %v932, %v944
    %v949 = vadd.f32 %v933, %v945
    %v950 = vadd.f32 %v934, %v946
    %v951 = vadd.f32 %v935, %v947
    %v952 = vlaneseq
    %v953 = vshrl.u32 %v952, 7
    %v954 = vsub.s32 2, %v953
    %v955 = vrot.slane %v915, %v954
    %v956 = vlaneseq
    %v957 = vshrl.u32 %v956, 7
    %v958 = vsub.s32 2, %v957
    %v959 = vrot.slane %v919, %v958
    %v960 = vmul.f32 %v193, %v955
    %v961 = vmul.f32 %v193, %v959
    %v962 = vmul.f32 %v197, %v955
    %v963 = vmul.f32 %v197, %v959
    %v964 = vadd.f32 %v948, %v960
    %v965 = vadd.f32 %v949, %v961
    %v966 = vadd.f32 %v950, %v962
    %v967 = vadd.f32 %v951, %v963
    %968 = vrot.lane.b32.xlu0 %v830, 126
    %v969 = vpop.permute.xlu0 %968
    %970 = vrot.lane.b32.xlu0 %v910, 126
    %v971 = vpop.permute.xlu0 %970
    %v972 = vsel %vm219, %v969, %v971
    %v976 = vsel %vm219, %v971, %v969
    %v977 = vlaneseq
    %v978 = vshrl.u32 %v977, 7
    %v979 = vsub.s32 0, %v978
    %v980 = vrot.slane %v972, %v979
    %v981 = vlaneseq
    %v982 = vshrl.u32 %v981, 7
    %v983 = vsub.s32 0, %v982
    %v984 = vrot.slane %v976, %v983
    %v985 = vmul.f32 %v227, %v980
    %v986 = vmul.f32 %v227, %v984
    %v987 = vmul.f32 %v231, %v980
    %v988 = vmul.f32 %v231, %v984
    %v989 = vadd.f32 %v964, %v985
    %v990 = vadd.f32 %v965, %v986
    %v991 = vadd.f32 %v966, %v987
    %v992 = vadd.f32 %v967, %v988
    %v993 = vlaneseq
    %v994 = vshrl.u32 %v993, 7
    %v995 = vsub.s32 1, %v994
    %v996 = vrot.slane %v972, %v995
    %v997 = vlaneseq
    %v998 = vshrl.u32 %v997, 7
    %v999 = vsub.s32 1, %v998
    %v1000 = vrot.slane %v976, %v999
    %v1001 = vmul.f32 %v251, %v996
    %v1002 = vmul.f32 %v251, %v1000
    %v1003 = vmul.f32 %v255, %v996
    %v1004 = vmul.f32 %v255, %v1000
    %v1005 = vadd.f32 %v989, %v1001
    %v1006 = vadd.f32 %v990, %v1002
    %v1007 = vadd.f32 %v991, %v1003
    %v1008 = vadd.f32 %v992, %v1004
    %v1009 = vlaneseq
    %v1010 = vshrl.u32 %v1009, 7
    %v1011 = vsub.s32 2, %v1010
    %v1012 = vrot.slane %v972, %v1011
    %v1013 = vlaneseq
    %v1014 = vshrl.u32 %v1013, 7
    %v1015 = vsub.s32 2, %v1014
    %v1016 = vrot.slane %v976, %v1015
    %v1017 = vmul.f32 %v275, %v1012
    %v1018 = vmul.f32 %v275, %v1016
    %v1019 = vmul.f32 %v279, %v1012
    %v1020 = vmul.f32 %v279, %v1016
    %v1021 = vadd.f32 %v1005, %v1017
    %v1022 = vadd.f32 %v1006, %v1018
    %v1023 = vadd.f32 %v1007, %v1019
    %v1024 = vadd.f32 %v1008, %v1020
    %1025 = vrot.lane.b32.xlu0 %v830, 112
    %v1026 = vpop.permute.xlu0 %1025
    %1027 = vrot.lane.b32.xlu0 %v910, 112
    %v1028 = vpop.permute.xlu0 %1027
    %v1029 = vsel %vm301, %v1026, %v1028
    %v1033 = vsel %vm301, %v1028, %v1026
    %v1034 = vlaneseq
    %v1035 = vshrl.u32 %v1034, 7
    %v1036 = vsub.s32 0, %v1035
    %v1037 = vrot.slane %v1029, %v1036
    %v1038 = vlaneseq
    %v1039 = vshrl.u32 %v1038, 7
    %v1040 = vsub.s32 0, %v1039
    %v1041 = vrot.slane %v1033, %v1040
    %v1042 = vmul.f32 %v309, %v1037
    %v1043 = vmul.f32 %v309, %v1041
    %v1044 = vmul.f32 %v313, %v1037
    %v1045 = vmul.f32 %v313, %v1041
    %v1046 = vadd.f32 %v1021, %v1042
    %v1047 = vadd.f32 %v1022, %v1043
    %v1048 = vadd.f32 %v1023, %v1044
    %v1049 = vadd.f32 %v1024, %v1045
    %v1050 = vlaneseq
    %v1051 = vshrl.u32 %v1050, 7
    %v1052 = vsub.s32 1, %v1051
    %v1053 = vrot.slane %v1029, %v1052
    %v1054 = vlaneseq
    %v1055 = vshrl.u32 %v1054, 7
    %v1056 = vsub.s32 1, %v1055
    %v1057 = vrot.slane %v1033, %v1056
    %v1058 = vmul.f32 %v333, %v1053
    %v1059 = vmul.f32 %v333, %v1057
    %v1060 = vmul.f32 %v337, %v1053
    %v1061 = vmul.f32 %v337, %v1057
    %v1062 = vadd.f32 %v1046, %v1058
    %v1063 = vadd.f32 %v1047, %v1059
    %v1064 = vadd.f32 %v1048, %v1060
    %v1065 = vadd.f32 %v1049, %v1061
    %v1066 = vlaneseq
    %v1067 = vshrl.u32 %v1066, 7
    %v1068 = vsub.s32 2, %v1067
    %v1069 = vrot.slane %v1029, %v1068
    %v1070 = vlaneseq
    %v1071 = vshrl.u32 %v1070, 7
    %v1072 = vsub.s32 2, %v1071
    %v1073 = vrot.slane %v1033, %v1072
    %v1074 = vmul.f32 %v357, %v1069
    %v1075 = vmul.f32 %v357, %v1073
    %v1076 = vmul.f32 %v361, %v1069
    %v1077 = vmul.f32 %v361, %v1073
    %v1078 = vadd.f32 %v1062, %v1074
    %v1079 = vadd.f32 %v1063, %v1075
    %v1080 = vadd.f32 %v1064, %v1076
    %v1081 = vadd.f32 %v1065, %v1077
    %1082 = vrot.lane.b32.xlu0 %v830, 111
    %v1083 = vpop.permute.xlu0 %1082
    %1084 = vrot.lane.b32.xlu0 %v910, 111
    %v1085 = vpop.permute.xlu0 %1084
    %v1086 = vsel %vm383, %v1083, %v1085
    %v1090 = vsel %vm383, %v1085, %v1083
    %v1091 = vlaneseq
    %v1092 = vshrl.u32 %v1091, 7
    %v1093 = vsub.s32 0, %v1092
    %v1094 = vrot.slane %v1086, %v1093
    %v1095 = vlaneseq
    %v1096 = vshrl.u32 %v1095, 7
    %v1097 = vsub.s32 0, %v1096
    %v1098 = vrot.slane %v1090, %v1097
    %v1099 = vmul.f32 %v391, %v1094
    %v1100 = vmul.f32 %v391, %v1098
    %v1101 = vmul.f32 %v395, %v1094
    %v1102 = vmul.f32 %v395, %v1098
    %v1103 = vadd.f32 %v1078, %v1099
    %v1104 = vadd.f32 %v1079, %v1100
    %v1105 = vadd.f32 %v1080, %v1101
    %v1106 = vadd.f32 %v1081, %v1102
    %v1107 = vlaneseq
    %v1108 = vshrl.u32 %v1107, 7
    %v1109 = vsub.s32 1, %v1108
    %v1110 = vrot.slane %v1086, %v1109
    %v1111 = vlaneseq
    %v1112 = vshrl.u32 %v1111, 7
    %v1113 = vsub.s32 1, %v1112
    %v1114 = vrot.slane %v1090, %v1113
    %v1115 = vmul.f32 %v415, %v1110
    %v1116 = vmul.f32 %v415, %v1114
    %v1117 = vmul.f32 %v419, %v1110
    %v1118 = vmul.f32 %v419, %v1114
    %v1119 = vadd.f32 %v1103, %v1115
    %v1120 = vadd.f32 %v1104, %v1116
    %v1121 = vadd.f32 %v1105, %v1117
    %v1122 = vadd.f32 %v1106, %v1118
    %v1123 = vlaneseq
    %v1124 = vshrl.u32 %v1123, 7
    %v1125 = vsub.s32 2, %v1124
    %v1126 = vrot.slane %v1086, %v1125
    %v1127 = vlaneseq
    %v1128 = vshrl.u32 %v1127, 7
    %v1129 = vsub.s32 2, %v1128
    %v1130 = vrot.slane %v1090, %v1129
    %v1131 = vmul.f32 %v439, %v1126
    %v1132 = vmul.f32 %v439, %v1130
    %v1133 = vmul.f32 %v443, %v1126
    %v1134 = vmul.f32 %v443, %v1130
    %v1135 = vadd.f32 %v1119, %v1131
    %v1136 = vadd.f32 %v1120, %v1132
    %v1137 = vadd.f32 %v1121, %v1133
    %v1138 = vadd.f32 %v1122, %v1134
    %1139 = vrot.lane.b32.xlu0 %v830, 110
    %v1140 = vpop.permute.xlu0 %1139
    %1141 = vrot.lane.b32.xlu0 %v910, 110
    %v1142 = vpop.permute.xlu0 %1141
    %v1143 = vsel %vm465, %v1140, %v1142
    %v1147 = vsel %vm465, %v1142, %v1140
    %v1148 = vlaneseq
    %v1149 = vshrl.u32 %v1148, 7
    %v1150 = vsub.s32 0, %v1149
    %v1151 = vrot.slane %v1143, %v1150
    %v1152 = vlaneseq
    %v1153 = vshrl.u32 %v1152, 7
    %v1154 = vsub.s32 0, %v1153
    %v1155 = vrot.slane %v1147, %v1154
    %v1156 = vmul.f32 %v473, %v1151
    %v1157 = vmul.f32 %v473, %v1155
    %v1158 = vmul.f32 %v477, %v1151
    %v1159 = vmul.f32 %v477, %v1155
    %v1160 = vadd.f32 %v1135, %v1156
    %v1161 = vadd.f32 %v1136, %v1157
    %v1162 = vadd.f32 %v1137, %v1158
    %v1163 = vadd.f32 %v1138, %v1159
    %v1164 = vlaneseq
    %v1165 = vshrl.u32 %v1164, 7
    %v1166 = vsub.s32 1, %v1165
    %v1167 = vrot.slane %v1143, %v1166
    %v1168 = vlaneseq
    %v1169 = vshrl.u32 %v1168, 7
    %v1170 = vsub.s32 1, %v1169
    %v1171 = vrot.slane %v1147, %v1170
    %v1172 = vmul.f32 %v497, %v1167
    %v1173 = vmul.f32 %v497, %v1171
    %v1174 = vmul.f32 %v501, %v1167
    %v1175 = vmul.f32 %v501, %v1171
    %v1176 = vadd.f32 %v1160, %v1172
    %v1177 = vadd.f32 %v1161, %v1173
    %v1178 = vadd.f32 %v1162, %v1174
    %v1179 = vadd.f32 %v1163, %v1175
    %v1180 = vlaneseq
    %v1181 = vshrl.u32 %v1180, 7
    %v1182 = vsub.s32 2, %v1181
    %v1183 = vrot.slane %v1143, %v1182
    %v1184 = vlaneseq
    %v1185 = vshrl.u32 %v1184, 7
    %v1186 = vsub.s32 2, %v1185
    %v1187 = vrot.slane %v1147, %v1186
    %v1188 = vmul.f32 %v521, %v1183
    %v1189 = vmul.f32 %v521, %v1187
    %v1190 = vmul.f32 %v525, %v1183
    %v1191 = vmul.f32 %v525, %v1187
    %v1192 = vadd.f32 %v1176, %v1188
    %v1193 = vadd.f32 %v1177, %v1189
    %v1194 = vadd.f32 %v1178, %v1190
    %v1195 = vadd.f32 %v1179, %v1191
    %1196 = vrot.lane.b32.xlu0 %v830, 96
    %v1197 = vpop.permute.xlu0 %1196
    %1198 = vrot.lane.b32.xlu0 %v910, 96
    %v1199 = vpop.permute.xlu0 %1198
    %v1200 = vsel %vm547, %v1197, %v1199
    %v1204 = vsel %vm547, %v1199, %v1197
    %v1205 = vlaneseq
    %v1206 = vshrl.u32 %v1205, 7
    %v1207 = vsub.s32 0, %v1206
    %v1208 = vrot.slane %v1200, %v1207
    %v1209 = vlaneseq
    %v1210 = vshrl.u32 %v1209, 7
    %v1211 = vsub.s32 0, %v1210
    %v1212 = vrot.slane %v1204, %v1211
    %v1213 = vmul.f32 %v555, %v1208
    %v1214 = vmul.f32 %v555, %v1212
    %v1215 = vmul.f32 %v559, %v1208
    %v1216 = vmul.f32 %v559, %v1212
    %v1217 = vadd.f32 %v1192, %v1213
    %v1218 = vadd.f32 %v1193, %v1214
    %v1219 = vadd.f32 %v1194, %v1215
    %v1220 = vadd.f32 %v1195, %v1216
    %v1221 = vlaneseq
    %v1222 = vshrl.u32 %v1221, 7
    %v1223 = vsub.s32 1, %v1222
    %v1224 = vrot.slane %v1200, %v1223
    %v1225 = vlaneseq
    %v1226 = vshrl.u32 %v1225, 7
    %v1227 = vsub.s32 1, %v1226
    %v1228 = vrot.slane %v1204, %v1227
    %v1229 = vmul.f32 %v579, %v1224
    %v1230 = vmul.f32 %v579, %v1228
    %v1231 = vmul.f32 %v583, %v1224
    %v1232 = vmul.f32 %v583, %v1228
    %v1233 = vadd.f32 %v1217, %v1229
    %v1234 = vadd.f32 %v1218, %v1230
    %v1235 = vadd.f32 %v1219, %v1231
    %v1236 = vadd.f32 %v1220, %v1232
    %v1237 = vlaneseq
    %v1238 = vshrl.u32 %v1237, 7
    %v1239 = vsub.s32 2, %v1238
    %v1240 = vrot.slane %v1200, %v1239
    %v1241 = vlaneseq
    %v1242 = vshrl.u32 %v1241, 7
    %v1243 = vsub.s32 2, %v1242
    %v1244 = vrot.slane %v1204, %v1243
    %v1245 = vmul.f32 %v603, %v1240
    %v1246 = vmul.f32 %v603, %v1244
    %v1247 = vmul.f32 %v607, %v1240
    %v1248 = vmul.f32 %v607, %v1244
    %v1249 = vadd.f32 %v1233, %v1245
    %v1250 = vadd.f32 %v1234, %v1246
    %v1251 = vadd.f32 %v1235, %v1247
    %v1252 = vadd.f32 %v1236, %v1248
    %1253 = vrot.lane.b32.xlu0 %v830, 95
    %v1254 = vpop.permute.xlu0 %1253
    %1255 = vrot.lane.b32.xlu0 %v910, 95
    %v1256 = vpop.permute.xlu0 %1255
    %v1257 = vsel %vm629, %v1254, %v1256
    %v1261 = vsel %vm629, %v1256, %v1254
    %v1262 = vlaneseq
    %v1263 = vshrl.u32 %v1262, 7
    %v1264 = vsub.s32 0, %v1263
    %v1265 = vrot.slane %v1257, %v1264
    %v1266 = vlaneseq
    %v1267 = vshrl.u32 %v1266, 7
    %v1268 = vsub.s32 0, %v1267
    %v1269 = vrot.slane %v1261, %v1268
    %v1270 = vmul.f32 %v637, %v1265
    %v1271 = vmul.f32 %v637, %v1269
    %v1272 = vmul.f32 %v641, %v1265
    %v1273 = vmul.f32 %v641, %v1269
    %v1274 = vadd.f32 %v1249, %v1270
    %v1275 = vadd.f32 %v1250, %v1271
    %v1276 = vadd.f32 %v1251, %v1272
    %v1277 = vadd.f32 %v1252, %v1273
    %v1278 = vlaneseq
    %v1279 = vshrl.u32 %v1278, 7
    %v1280 = vsub.s32 1, %v1279
    %v1281 = vrot.slane %v1257, %v1280
    %v1282 = vlaneseq
    %v1283 = vshrl.u32 %v1282, 7
    %v1284 = vsub.s32 1, %v1283
    %v1285 = vrot.slane %v1261, %v1284
    %v1286 = vmul.f32 %v661, %v1281
    %v1287 = vmul.f32 %v661, %v1285
    %v1288 = vmul.f32 %v665, %v1281
    %v1289 = vmul.f32 %v665, %v1285
    %v1290 = vadd.f32 %v1274, %v1286
    %v1291 = vadd.f32 %v1275, %v1287
    %v1292 = vadd.f32 %v1276, %v1288
    %v1293 = vadd.f32 %v1277, %v1289
    %v1294 = vlaneseq
    %v1295 = vshrl.u32 %v1294, 7
    %v1296 = vsub.s32 2, %v1295
    %v1297 = vrot.slane %v1257, %v1296
    %v1298 = vlaneseq
    %v1299 = vshrl.u32 %v1298, 7
    %v1300 = vsub.s32 2, %v1299
    %v1301 = vrot.slane %v1261, %v1300
    %v1302 = vmul.f32 %v685, %v1297
    %v1303 = vmul.f32 %v685, %v1301
    %v1304 = vmul.f32 %v689, %v1297
    %v1305 = vmul.f32 %v689, %v1301
    %v1306 = vadd.f32 %v1290, %v1302
    %v1307 = vadd.f32 %v1291, %v1303
    %v1308 = vadd.f32 %v1292, %v1304
    %v1309 = vadd.f32 %v1293, %v1305
    %1310 = vrot.lane.b32.xlu0 %v830, 94
    %v1311 = vpop.permute.xlu0 %1310
    %1312 = vrot.lane.b32.xlu0 %v910, 94
    %v1313 = vpop.permute.xlu0 %1312
    %v1314 = vsel %vm711, %v1311, %v1313
    %v1318 = vsel %vm711, %v1313, %v1311
    %v1319 = vlaneseq
    %v1320 = vshrl.u32 %v1319, 7
    %v1321 = vsub.s32 0, %v1320
    %v1322 = vrot.slane %v1314, %v1321
    %v1323 = vlaneseq
    %v1324 = vshrl.u32 %v1323, 7
    %v1325 = vsub.s32 0, %v1324
    %v1326 = vrot.slane %v1318, %v1325
    %v1327 = vmul.f32 %v719, %v1322
    %v1328 = vmul.f32 %v719, %v1326
    %v1329 = vmul.f32 %v723, %v1322
    %v1330 = vmul.f32 %v723, %v1326
    %v1331 = vadd.f32 %v1306, %v1327
    %v1332 = vadd.f32 %v1307, %v1328
    %v1333 = vadd.f32 %v1308, %v1329
    %v1334 = vadd.f32 %v1309, %v1330
    %v1335 = vlaneseq
    %v1336 = vshrl.u32 %v1335, 7
    %v1337 = vsub.s32 1, %v1336
    %v1338 = vrot.slane %v1314, %v1337
    %v1339 = vlaneseq
    %v1340 = vshrl.u32 %v1339, 7
    %v1341 = vsub.s32 1, %v1340
    %v1342 = vrot.slane %v1318, %v1341
    %v1343 = vmul.f32 %v743, %v1338
    %v1344 = vmul.f32 %v743, %v1342
    %v1345 = vmul.f32 %v747, %v1338
    %v1346 = vmul.f32 %v747, %v1342
    %v1347 = vadd.f32 %v1331, %v1343
    %v1348 = vadd.f32 %v1332, %v1344
    %v1349 = vadd.f32 %v1333, %v1345
    %v1350 = vadd.f32 %v1334, %v1346
    %v1351 = vlaneseq
    %v1352 = vshrl.u32 %v1351, 7
    %v1353 = vsub.s32 2, %v1352
    %v1354 = vrot.slane %v1314, %v1353
    %v1355 = vlaneseq
    %v1356 = vshrl.u32 %v1355, 7
    %v1357 = vsub.s32 2, %v1356
    %v1358 = vrot.slane %v1318, %v1357
    %v1359 = vmul.f32 %v767, %v1354
    %v1360 = vmul.f32 %v767, %v1358
    %v1361 = vmul.f32 %v771, %v1354
    %v1362 = vmul.f32 %v771, %v1358
    %v1363 = vadd.f32 %v1347, %v1359
    %v1364 = vadd.f32 %v1348, %v1360
    %v1365 = vadd.f32 %v1349, %v1361
    %v1366 = vadd.f32 %v1350, %v1362
    %v1367 = vadd.f32 %v1363, %v792
    %v1368 = vadd.f32 %v1364, %v792
    %v1369 = vadd.f32 %v1365, %v797
    %v1370 = vadd.f32 %v1366, %v797
    %v1371 = vmin.f32 %v1367, 0.5
    %v1372 = vmin.f32 %v1368, 0.5
    %v1373 = vmin.f32 %v1369, 0.5
    %v1374 = vmin.f32 %v1370, 0.5
    %v1375 = vmul.f32 %v1371, 2.0
    %v1376 = vmul.f32 %v1372, 2.0
    %v1377 = vmul.f32 %v1373, 2.0
    %v1378 = vmul.f32 %v1374, 2.0
    %v1379 = vadd.f32 %v1375, %v814
    %v1380 = vadd.f32 %v1376, %v814
    %v1381 = vadd.f32 %v1377, %v819
    %v1382 = vadd.f32 %v1378, %v819
    %s1383 = scalar_lea.vmem [#allocation2], 32
    %1384 = vst [vmem:[%s1383] sm:$0xff] %v1379
    %1385 = vst [vmem:[%s1383 + $0x8] sm:$0xff] %v1380
    %1386 = vst [vmem:[%s1383 + $0x10] sm:$0xff] %v1381
    %1387 = vst [vmem:[%s1383 + $0x18] sm:$0xff] %v1382
    // Predicated region
    $region18: #{tpu_custom_call.1} parent=1 // pred_check
      _
    $region19: #{tpu_custom_call.1} parent=1 // pred_check_branch
      %1389 = sbr.rel (0) target = $region21
    $region20: #{tpu_custom_call.1} parent=1 // pred_region
      %s1391 = ssub.s32 1024, 1024
      %1392 = vsyncadd [#allocation3], %s1391
      %s1393 = sshll.u32 [#allocation2], 4
      %s1394 = int_to_ptr.vmem [resolvable:$true] %s1393
      %1399 = dma.vmem_to_hbm [thread:$0]  %s1394, 1024, %s4, [#allocation3], 256, 256, 16
    $region21: #{tpu_custom_call.1} parent=1 // pred_fallthru
      _
    // Predicated region
    $region22: #{tpu_custom_call.1} parent=1 // pred_check
      _
    $region23: #{tpu_custom_call.1} parent=1 // pred_check_branch
      %1401 = sbr.rel (0) target = $region25
    $region24: #{tpu_custom_call.1} parent=1 // pred_region
      %1402 = dma.done [#allocation3], 1024
    $region25: #{tpu_custom_call.1} parent=1 // pred_fallthru
      _
    %1403 = vsyncpa [#allocation3], 1

</llo_original>
